<compile_context>
chip_gen: v7x
topology: tpu7x:2x2x1
jax: 0.10.0
libtpu: 0.0.40
codegen_flags: <defaults>
</compile_context>

<pallas_src>
import functools

import jax
import jax.numpy as jnp
import numpy as np
from jax.experimental import pallas as pl
from jax.experimental.pallas import tpu as pltpu


# ----------------------------------------------------------------------------
# Fused kernel: conv(3x3, pad=1) + ReLU + maxpool(8x8) + flatten + linear
# ----------------------------------------------------------------------------
def _med_smallest_kernel(x_ref, wtab_ref, btab_ref, wfc_ref, bfc_ref, out_ref,
                         xd_scr, *, hw, pool, cout, ksize):
    """Refs (per batch tile TB):
      x_ref    (TB, hw, hw)      f32 VMEM : raw input image (Cin = 1)
      wtab_ref (k*k, cout*hw)    f32 VMEM : per-lane conv weights, border lanes zeroed
      btab_ref (1, cout*hw)      f32 VMEM : per-lane conv bias
      wfc_ref  (feat, 128)       f32 VMEM : fc weight, rows permuted, classes 0-padded
      bfc_ref  (1, 128)          f32 VMEM : fc bias, classes 0-padded
      out_ref  (TB, 1, 128)      f32 VMEM : lane-dense logits block
      xd_scr   (TB, hw+2, 4*hw)  f32 VMEM : H-halo'd, lane-duplicated image slab
    """
    tb = x_ref.shape[0]
    lanes = cout * hw                     # 128 = both channels packed along lanes
    npool = hw // pool                    # 8
    base = hw - 1                         # lane offset of the kw == 0 tap window

    # ---- build the halo slab once per step: zero borders, image duplicated
    #      into lanes [hw, 2*hw) and [2*hw, 3*hw)  (channel 0 / channel 1).
    xd_scr[...] = jnp.zeros((tb, hw + 2, 4 * hw), jnp.float32)
    img = x_ref[...]                      # (TB, hw, hw)
    xd_scr[:, 1:hw + 1, hw:2 * hw] = img
    xd_scr[:, 1:hw + 1, 2 * hw:3 * hw] = img

    # ---- conv 3x3 ('same'): 9 full-width (TB, hw, 128) taps, both channels at
    #      once.  Each tap window is loaded exactly once; W-border zero padding
    #      is folded into the zeroed border lanes of the weight table.
    wtab = wtab_ref[...]                  # (9, 128)
    acc = None
    for kh in range(ksize):
        for kw in range(ksize):
            win = xd_scr[:, kh:kh + hw, base + kw:base + kw + lanes]
            term = wtab[kh * ksize + kw] * win
            acc = term if acc is None else acc + term
    acc = jnp.maximum(acc + btab_ref[...], 0.0)                 # bias + ReLU

    # ---- max-pool 8x8, H direction: tile-aligned sublane split + reduce
    hp = jnp.max(acc.reshape(tb, npool, pool, lanes), axis=2)   # (TB, 8, 128)

    # ---- max-pool W direction + flatten: 16 aligned lane-group maxima,
    #      concatenated into one lane-dense (TB, 128) feature block (no scratch,
    #      no masked stores).  Feature order is (c, pw, ph); the fc weight rows
    #      are permuted once in the wrapper to match.
    parts = []
    for g in range(cout * npool):                 # lane group g = (c, pw)
        grp = hp[:, :, g * pool:(g + 1) * pool]   # (TB, 8, 8)
        parts.append(jnp.max(grp, axis=2))        # (TB, 8), axis = ph
    feat = jnp.concatenate(parts, axis=1)         # (TB, 128)

    # ---- FC head on the MXU, lane-dense (classes padded to 128) output
    logits = jnp.dot(feat, wfc_ref[...], preferred_element_type=jnp.float32)
    out_ref[...] = (logits + bfc_ref[...])[:, None, :]


# ----------------------------------------------------------------------------
# Wrapper: batch-gridded pallas_call, everything VMEM resident per tile
# ----------------------------------------------------------------------------
def med_smallest_forward(params, x_nchw, *, pool=8, batch_tile=2):
    n, cin, h, w = x_nchw.shape
    cout, _, ksize, _ = params["conv1_w"].shape
    num_class, in_feat = params["fc1_w"].shape
    npool = h // pool
    lanes = cout * h
    kpad = 128                                   # lane-dense logits width

    assert cin == 1 and h == w and h % pool == 0
    assert ksize == 3 and (ksize - 1) // 2 == 1  # 'same' 3x3 conv
    assert in_feat == cout * npool * npool
    assert lanes == 128 and in_feat == 128       # 2 channels x 64 cols fill a vreg
    assert num_class <= kpad

    # TB = 2 keeps acc + one live tap in vregs (~48 vregs, no spill); larger
    # batches scale through the parallel grid (2 TCs on v7x) and the pipelined
    # input DMA rather than through bigger tiles.
    tb = max(1, min(batch_tile, n))
    n_pad = ((n + tb - 1) // tb) * tb

    x = x_nchw[:, 0].astype(jnp.float32)         # (N, h, h): squeeze Cin, no pad
    if n_pad != n:
        x = jnp.pad(x, ((0, n_pad - n), (0, 0), (0, 0)))

    # Per-lane conv weight table: lane l holds conv_w[c = l // h, kh, kw]; the
    # border lanes (col 0 for kw=0, col h-1 for kw=2, per channel) are zeroed,
    # which implements the W-direction zero padding.
    w9 = params["conv1_w"].reshape(cout, ksize * ksize)          # (c, tap)
    wtab = jnp.repeat(w9.T, h, axis=1)                           # (9, lanes)
    border = np.ones((ksize * ksize, lanes), np.float32)
    for kh in range(ksize):
        for c in range(cout):
            border[kh * ksize + 0, c * h] = 0.0                  # kw = 0, col 0
            border[kh * ksize + (ksize - 1), c * h + h - 1] = 0.0  # kw = 2, col h-1
    wtab = wtab * border
    btab = jnp.repeat(params["conv1_b"], h).reshape(1, lanes)

    # fc weight: kernel emits features in (c, pw, ph) order; permute the torch
    # (c, ph, pw) columns once here and zero-pad classes to a dense 128 lanes.
    w4 = params["fc1_w"].reshape(num_class, cout, npool, npool)  # (k, c, ph, pw)
    wfc = jnp.transpose(w4, (1, 3, 2, 0)).reshape(in_feat, num_class)
    wfc = jnp.pad(wfc, ((0, 0), (0, kpad - num_class)))
    bfc = jnp.pad(params["fc1_b"], (0, kpad - num_class)).reshape(1, kpad)

    kernel = functools.partial(_med_smallest_kernel, hw=h, pool=pool,
                               cout=cout, ksize=ksize)
    out = pl.pallas_call(
        kernel,
        out_shape=jax.ShapeDtypeStruct((n_pad, 1, kpad), jnp.float32),
        grid=(n_pad // tb,),
        in_specs=[
            pl.BlockSpec((tb, h, h), lambda i: (i, 0, 0)),
            pl.BlockSpec((ksize * ksize, lanes), lambda i: (0, 0)),
            pl.BlockSpec((1, lanes), lambda i: (0, 0)),
            pl.BlockSpec((in_feat, kpad), lambda i: (0, 0)),
            pl.BlockSpec((1, kpad), lambda i: (0, 0)),
        ],
        out_specs=pl.BlockSpec((tb, 1, kpad), lambda i: (i, 0, 0)),
        scratch_shapes=[pltpu.VMEM((tb, h + 2, 4 * h), jnp.float32)],
        compiler_params=pltpu.CompilerParams(
            dimension_semantics=("parallel",)),
    )(x, wtab, btab, wfc, bfc)
    return out[:n, 0, :num_class]


# ----------------------------------------------------------------------------
# Params + float64 numpy reference (independent check of the torch semantics)
# ----------------------------------------------------------------------------
def init_params(key, num_class=6):
    k1, k2, k3, k4 = jax.random.split(key, 4)
    return {
        "conv1_w": jax.random.normal(k1, (2, 1, 3, 3), jnp.float32) / 3.0,
        "conv1_b": 0.05 * jax.random.normal(k2, (2,), jnp.float32),
        "fc1_w": (jax.random.normal(k3, (num_class, 128), jnp.float32)
                  / jnp.sqrt(128.0)),
        "fc1_b": 0.05 * jax.random.normal(k4, (num_class,), jnp.float32),
    }


def reference_forward_np(params, x_nchw):
    """MedSmallestNet.forward in float64 numpy (torch layout/flatten order)."""
    x = np.asarray(x_nchw, np.float64)
    wc = np.asarray(params["conv1_w"], np.float64)
    bc = np.asarray(params["conv1_b"], np.float64)
    wf = np.asarray(params["fc1_w"], np.float64)
    bf = np.asarray(params["fc1_b"], np.float64)
    n, _, h, _ = x.shape
    cout, _, k, _ = wc.shape
    pad = (k - 1) // 2
    xp = np.pad(x[:, 0], ((0, 0), (pad, pad), (pad, pad)))
    conv = np.zeros((n, cout, h, h))
    for c in range(cout):
        a = np.full((n, h, h), bc[c])
        for kh in range(k):
            for kw in range(k):
                a += wc[c, 0, kh, kw] * xp[:, kh:kh + h, kw:kw + h]
        conv[:, c] = a
    r = np.maximum(conv, 0.0)
    p = r.reshape(n, cout, h // 8, 8, h // 8, 8).max(axis=(3, 5))  # (n,c,8,8)
    feat = p.reshape(n, -1)                                        # (c,ph,pw)
    return feat @ wf.T + bf


if __name__ == "__main__":
    # fc1 expects 128 = 2 * (64/8)^2 features -> input is (batch, 1, 64, 64).
    NUM_CLASS, BATCH, HW = 6, 2, 64

    key = jax.random.PRNGKey(0)
    k_params, k_x = jax.random.split(key)
    params = init_params(k_params, NUM_CLASS)
    x = jax.random.normal(k_x, (BATCH, 1, HW, HW), jnp.float32)

    fwd = jax.jit(med_smallest_forward)
    out = jax.block_until_ready(fwd(params, x))

    assert out.shape == (BATCH, NUM_CLASS), out.shape
    assert bool(jnp.all(jnp.isfinite(out)))
    ref = reference_forward_np(params, x)
    np.testing.assert_allclose(np.asarray(out), ref, rtol=1e-4, atol=1e-4)
    print("KERNEL_OK")
</pallas_src>

<mosaic_0001>
module attributes {stable_mosaic.version = 11 : i64} {
  func.func @_med_smallest_kernel(%arg0: i32, %arg1: memref<2x64x64xf32, #tpu.memory_space<vmem>>, %arg2: memref<9x128xf32, #tpu.memory_space<vmem>>, %arg3: memref<1x128xf32, #tpu.memory_space<vmem>>, %arg4: memref<128x128xf32, #tpu.memory_space<vmem>>, %arg5: memref<1x128xf32, #tpu.memory_space<vmem>>, %arg6: memref<2x1x128xf32, #tpu.memory_space<vmem>>, %arg7: memref<2x66x256xf32, #tpu.memory_space<vmem>>) attributes {dimension_semantics = [#tpu.dimension_semantics<parallel>], iteration_bounds = array<i64: 1>, scalar_prefetch = 0 : i64, scratch_operands = 1 : i64, tpu.core_type = #tpu.core_type<tc>, window_params = [{transform_indices = @transform_0, window_bounds = array<i64: 2, 64, 64>}, {pipeline_mode = #tpu.pipeline_mode<synchronous>, transform_indices = @transform_1, window_bounds = array<i64: 9, 128>}, {pipeline_mode = #tpu.pipeline_mode<synchronous>, transform_indices = @transform_2, window_bounds = array<i64: 1, 128>}, {pipeline_mode = #tpu.pipeline_mode<synchronous>, transform_indices = @transform_3, window_bounds = array<i64: 128, 128>}, {pipeline_mode = #tpu.pipeline_mode<synchronous>, transform_indices = @transform_4, window_bounds = array<i64: 1, 128>}, {transform_indices = @transform_5, window_bounds = array<i64: 2, 1, 128>}]} {
    %cst = arith.constant 0.000000e+00 : f32
    %0 = vector.broadcast %cst : f32 to vector<2x66x256xf32>
    %c0 = arith.constant 0 : index
    %c0_0 = arith.constant 0 : index
    %c0_1 = arith.constant 0 : index
    %1 = vector.load %arg7[%c0, %c0_0, %c0_1] : memref<2x66x256xf32, #tpu.memory_space<vmem>>, vector<2x66x256xf32>
    tpu.vector_store %arg7[%c0, %c0_0, %c0_1], %0 {strides = array<i32>} : memref<2x66x256xf32, #tpu.memory_space<vmem>>, vector<2x66x256xf32>,
    %c0_2 = arith.constant 0 : index
    %c0_3 = arith.constant 0 : index
    %c0_4 = arith.constant 0 : index
    %2 = vector.load %arg1[%c0_2, %c0_3, %c0_4] : memref<2x64x64xf32, #tpu.memory_space<vmem>>, vector<2x64x64xf32>
    %c0_5 = arith.constant 0 : index
    %c1 = arith.constant 1 : index
    %c64 = arith.constant 64 : index
    %3 = vector.load %arg7[%c0_5, %c1, %c64] : memref<2x66x256xf32, #tpu.memory_space<vmem>>, vector<2x64x64xf32>
    tpu.vector_store %arg7[%c0_5, %c1, %c64], %2 {strides = array<i32>} : memref<2x66x256xf32, #tpu.memory_space<vmem>>, vector<2x64x64xf32>,
    %c0_6 = arith.constant 0 : index
    %c1_7 = arith.constant 1 : index
    %c128 = arith.constant 128 : index
    %4 = vector.load %arg7[%c0_6, %c1_7, %c128] : memref<2x66x256xf32, #tpu.memory_space<vmem>>, vector<2x64x64xf32>
    tpu.vector_store %arg7[%c0_6, %c1_7, %c128], %2 {strides = array<i32>} : memref<2x66x256xf32, #tpu.memory_space<vmem>>, vector<2x64x64xf32>,
    %c0_8 = arith.constant 0 : index
    %c0_9 = arith.constant 0 : index
    %5 = vector.load %arg2[%c0_8, %c0_9] : memref<9x128xf32, #tpu.memory_space<vmem>>, vector<9x128xf32>
    %c0_10 = arith.constant 0 : index
    %c0_11 = arith.constant 0 : index
    %c63 = arith.constant 63 : index
    %6 = vector.load %arg7[%c0_10, %c0_11, %c63] : memref<2x66x256xf32, #tpu.memory_space<vmem>>, vector<2x64x128xf32>
    %7 = vector.extract_strided_slice %5 {offsets = [0, 0], sizes = [1, 128], strides = [1, 1]} : vector<9x128xf32> to vector<1x128xf32>
    %8 = vector.shape_cast %7 : vector<1x128xf32> to vector<128xf32>
    %9 = vector.shape_cast %8 : vector<128xf32> to vector<1x1x128xf32>
    %10 = vector.broadcast %9 : vector<1x1x128xf32> to vector<2x64x128xf32>
    %11 = arith.mulf %10, %6 : vector<2x64x128xf32>
    %c0_12 = arith.constant 0 : index
    %c0_13 = arith.constant 0 : index
    %c64_14 = arith.constant 64 : index
    %12 = vector.load %arg7[%c0_12, %c0_13, %c64_14] : memref<2x66x256xf32, #tpu.memory_space<vmem>>, vector<2x64x128xf32>
    %13 = vector.extract_strided_slice %5 {offsets = [1, 0], sizes = [1, 128], strides = [1, 1]} : vector<9x128xf32> to vector<1x128xf32>
    %14 = vector.shape_cast %13 : vector<1x128xf32> to vector<128xf32>
    %15 = vector.shape_cast %14 : vector<128xf32> to vector<1x1x128xf32>
    %16 = vector.broadcast %15 : vector<1x1x128xf32> to vector<2x64x128xf32>
    %17 = arith.mulf %16, %12 : vector<2x64x128xf32>
    %18 = arith.addf %11, %17 : vector<2x64x128xf32>
    %c0_15 = arith.constant 0 : index
    %c0_16 = arith.constant 0 : index
    %c65 = arith.constant 65 : index
    %19 = vector.load %arg7[%c0_15, %c0_16, %c65] : memref<2x66x256xf32, #tpu.memory_space<vmem>>, vector<2x64x128xf32>
    %20 = vector.extract_strided_slice %5 {offsets = [2, 0], sizes = [1, 128], strides = [1, 1]} : vector<9x128xf32> to vector<1x128xf32>
    %21 = vector.shape_cast %20 : vector<1x128xf32> to vector<128xf32>
    %22 = vector.shape_cast %21 : vector<128xf32> to vector<1x1x128xf32>
    %23 = vector.broadcast %22 : vector<1x1x128xf32> to vector<2x64x128xf32>
    %24 = arith.mulf %23, %19 : vector<2x64x128xf32>
    %25 = arith.addf %18, %24 : vector<2x64x128xf32>
    %c0_17 = arith.constant 0 : index
    %c1_18 = arith.constant 1 : index
    %c63_19 = arith.constant 63 : index
    %26 = vector.load %arg7[%c0_17, %c1_18, %c63_19] : memref<2x66x256xf32, #tpu.memory_space<vmem>>, vector<2x64x128xf32>
    %27 = vector.extract_strided_slice %5 {offsets = [3, 0], sizes = [1, 128], strides = [1, 1]} : vector<9x128xf32> to vector<1x128xf32>
    %28 = vector.shape_cast %27 : vector<1x128xf32> to vector<128xf32>
    %29 = vector.shape_cast %28 : vector<128xf32> to vector<1x1x128xf32>
    %30 = vector.broadcast %29 : vector<1x1x128xf32> to vector<2x64x128xf32>
    %31 = arith.mulf %30, %26 : vector<2x64x128xf32>
    %32 = arith.addf %25, %31 : vector<2x64x128xf32>
    %c0_20 = arith.constant 0 : index
    %c1_21 = arith.constant 1 : index
    %c64_22 = arith.constant 64 : index
    %33 = vector.load %arg7[%c0_20, %c1_21, %c64_22] : memref<2x66x256xf32, #tpu.memory_space<vmem>>, vector<2x64x128xf32>
    %34 = vector.extract_strided_slice %5 {offsets = [4, 0], sizes = [1, 128], strides = [1, 1]} : vector<9x128xf32> to vector<1x128xf32>
    %35 = vector.shape_cast %34 : vector<1x128xf32> to vector<128xf32>
    %36 = vector.shape_cast %35 : vector<128xf32> to vector<1x1x128xf32>
    %37 = vector.broadcast %36 : vector<1x1x128xf32> to vector<2x64x128xf32>
    %38 = arith.mulf %37, %33 : vector<2x64x128xf32>
    %39 = arith.addf %32, %38 : vector<2x64x128xf32>
    %c0_23 = arith.constant 0 : index
    %c1_24 = arith.constant 1 : index
    %c65_25 = arith.constant 65 : index
    %40 = vector.load %arg7[%c0_23, %c1_24, %c65_25] : memref<2x66x256xf32, #tpu.memory_space<vmem>>, vector<2x64x128xf32>
    %41 = vector.extract_strided_slice %5 {offsets = [5, 0], sizes = [1, 128], strides = [1, 1]} : vector<9x128xf32> to vector<1x128xf32>
    %42 = vector.shape_cast %41 : vector<1x128xf32> to vector<128xf32>
    %43 = vector.shape_cast %42 : vector<128xf32> to vector<1x1x128xf32>
    %44 = vector.broadcast %43 : vector<1x1x128xf32> to vector<2x64x128xf32>
    %45 = arith.mulf %44, %40 : vector<2x64x128xf32>
    %46 = arith.addf %39, %45 : vector<2x64x128xf32>
    %c0_26 = arith.constant 0 : index
    %c2 = arith.constant 2 : index
    %c63_27 = arith.constant 63 : index
    %47 = vector.load %arg7[%c0_26, %c2, %c63_27] : memref<2x66x256xf32, #tpu.memory_space<vmem>>, vector<2x64x128xf32>
    %48 = vector.extract_strided_slice %5 {offsets = [6, 0], sizes = [1, 128], strides = [1, 1]} : vector<9x128xf32> to vector<1x128xf32>
    %49 = vector.shape_cast %48 : vector<1x128xf32> to vector<128xf32>
    %50 = vector.shape_cast %49 : vector<128xf32> to vector<1x1x128xf32>
    %51 = vector.broadcast %50 : vector<1x1x128xf32> to vector<2x64x128xf32>
    %52 = arith.mulf %51, %47 : vector<2x64x128xf32>
    %53 = arith.addf %46, %52 : vector<2x64x128xf32>
    %c0_28 = arith.constant 0 : index
    %c2_29 = arith.constant 2 : index
    %c64_30 = arith.constant 64 : index
    %54 = vector.load %arg7[%c0_28, %c2_29, %c64_30] : memref<2x66x256xf32, #tpu.memory_space<vmem>>, vector<2x64x128xf32>
    %55 = vector.extract_strided_slice %5 {offsets = [7, 0], sizes = [1, 128], strides = [1, 1]} : vector<9x128xf32> to vector<1x128xf32>
    %56 = vector.shape_cast %55 : vector<1x128xf32> to vector<128xf32>
    %57 = vector.shape_cast %56 : vector<128xf32> to vector<1x1x128xf32>
    %58 = vector.broadcast %57 : vector<1x1x128xf32> to vector<2x64x128xf32>
    %59 = arith.mulf %58, %54 : vector<2x64x128xf32>
    %60 = arith.addf %53, %59 : vector<2x64x128xf32>
    %c0_31 = arith.constant 0 : index
    %c2_32 = arith.constant 2 : index
    %c65_33 = arith.constant 65 : index
    %61 = vector.load %arg7[%c0_31, %c2_32, %c65_33] : memref<2x66x256xf32, #tpu.memory_space<vmem>>, vector<2x64x128xf32>
    %62 = vector.extract_strided_slice %5 {offsets = [8, 0], sizes = [1, 128], strides = [1, 1]} : vector<9x128xf32> to vector<1x128xf32>
    %63 = vector.shape_cast %62 : vector<1x128xf32> to vector<128xf32>
    %64 = vector.shape_cast %63 : vector<128xf32> to vector<1x1x128xf32>
    %65 = vector.broadcast %64 : vector<1x1x128xf32> to vector<2x64x128xf32>
    %66 = arith.mulf %65, %61 : vector<2x64x128xf32>
    %67 = arith.addf %60, %66 : vector<2x64x128xf32>
    %c0_34 = arith.constant 0 : index
    %c0_35 = arith.constant 0 : index
    %68 = vector.load %arg3[%c0_34, %c0_35] : memref<1x128xf32, #tpu.memory_space<vmem>>, vector<1x128xf32>
    %69 = vector.shape_cast %68 : vector<1x128xf32> to vector<1x1x128xf32>
    %70 = vector.broadcast %69 : vector<1x1x128xf32> to vector<2x64x128xf32>
    %71 = arith.addf %67, %70 : vector<2x64x128xf32>
    %cst_36 = arith.constant 0.000000e+00 : f32
    %72 = vector.broadcast %cst_36 : f32 to vector<2x64x128xf32>
    %73 = arith.maximumf %71, %72 : vector<2x64x128xf32>
    %74 = vector.shape_cast %73 : vector<2x64x128xf32> to vector<2x8x8x128xf32>
    %cst_37 = arith.constant dense<0xFF800000> : vector<2x8x128xf32>
    %75 = vector.multi_reduction <maximumf>, %74, %cst_37 [2] : vector<2x8x8x128xf32> to vector<2x8x128xf32>
    %76 = vector.extract_strided_slice %75 {offsets = [0, 0, 0], sizes = [2, 8, 8], strides = [1, 1, 1]} : vector<2x8x128xf32> to vector<2x8x8xf32>
    %cst_38 = arith.constant dense<0xFF800000> : vector<2x8xf32>
    %77 = vector.multi_reduction <maximumf>, %76, %cst_38 [2] : vector<2x8x8xf32> to vector<2x8xf32>
    %78 = vector.extract_strided_slice %75 {offsets = [0, 0, 8], sizes = [2, 8, 8], strides = [1, 1, 1]} : vector<2x8x128xf32> to vector<2x8x8xf32>
    %cst_39 = arith.constant dense<0xFF800000> : vector<2x8xf32>
    %79 = vector.multi_reduction <maximumf>, %78, %cst_39 [2] : vector<2x8x8xf32> to vector<2x8xf32>
    %80 = vector.extract_strided_slice %75 {offsets = [0, 0, 16], sizes = [2, 8, 8], strides = [1, 1, 1]} : vector<2x8x128xf32> to vector<2x8x8xf32>
    %cst_40 = arith.constant dense<0xFF800000> : vector<2x8xf32>
    %81 = vector.multi_reduction <maximumf>, %80, %cst_40 [2] : vector<2x8x8xf32> to vector<2x8xf32>
    %82 = vector.extract_strided_slice %75 {offsets = [0, 0, 24], sizes = [2, 8, 8], strides = [1, 1, 1]} : vector<2x8x128xf32> to vector<2x8x8xf32>
    %cst_41 = arith.constant dense<0xFF800000> : vector<2x8xf32>
    %83 = vector.multi_reduction <maximumf>, %82, %cst_41 [2] : vector<2x8x8xf32> to vector<2x8xf32>
    %84 = vector.extract_strided_slice %75 {offsets = [0, 0, 32], sizes = [2, 8, 8], strides = [1, 1, 1]} : vector<2x8x128xf32> to vector<2x8x8xf32>
    %cst_42 = arith.constant dense<0xFF800000> : vector<2x8xf32>
    %85 = vector.multi_reduction <maximumf>, %84, %cst_42 [2] : vector<2x8x8xf32> to vector<2x8xf32>
    %86 = vector.extract_strided_slice %75 {offsets = [0, 0, 40], sizes = [2, 8, 8], strides = [1, 1, 1]} : vector<2x8x128xf32> to vector<2x8x8xf32>
    %cst_43 = arith.constant dense<0xFF800000> : vector<2x8xf32>
    %87 = vector.multi_reduction <maximumf>, %86, %cst_43 [2] : vector<2x8x8xf32> to vector<2x8xf32>
    %88 = vector.extract_strided_slice %75 {offsets = [0, 0, 48], sizes = [2, 8, 8], strides = [1, 1, 1]} : vector<2x8x128xf32> to vector<2x8x8xf32>
    %cst_44 = arith.constant dense<0xFF800000> : vector<2x8xf32>
    %89 = vector.multi_reduction <maximumf>, %88, %cst_44 [2] : vector<2x8x8xf32> to vector<2x8xf32>
    %90 = vector.extract_strided_slice %75 {offsets = [0, 0, 56], sizes = [2, 8, 8], strides = [1, 1, 1]} : vector<2x8x128xf32> to vector<2x8x8xf32>
    %cst_45 = arith.constant dense<0xFF800000> : vector<2x8xf32>
    %91 = vector.multi_reduction <maximumf>, %90, %cst_45 [2] : vector<2x8x8xf32> to vector<2x8xf32>
    %92 = vector.extract_strided_slice %75 {offsets = [0, 0, 64], sizes = [2, 8, 8], strides = [1, 1, 1]} : vector<2x8x128xf32> to vector<2x8x8xf32>
    %cst_46 = arith.constant dense<0xFF800000> : vector<2x8xf32>
    %93 = vector.multi_reduction <maximumf>, %92, %cst_46 [2] : vector<2x8x8xf32> to vector<2x8xf32>
    %94 = vector.extract_strided_slice %75 {offsets = [0, 0, 72], sizes = [2, 8, 8], strides = [1, 1, 1]} : vector<2x8x128xf32> to vector<2x8x8xf32>
    %cst_47 = arith.constant dense<0xFF800000> : vector<2x8xf32>
    %95 = vector.multi_reduction <maximumf>, %94, %cst_47 [2] : vector<2x8x8xf32> to vector<2x8xf32>
    %96 = vector.extract_strided_slice %75 {offsets = [0, 0, 80], sizes = [2, 8, 8], strides = [1, 1, 1]} : vector<2x8x128xf32> to vector<2x8x8xf32>
    %cst_48 = arith.constant dense<0xFF800000> : vector<2x8xf32>
    %97 = vector.multi_reduction <maximumf>, %96, %cst_48 [2] : vector<2x8x8xf32> to vector<2x8xf32>
    %98 = vector.extract_strided_slice %75 {offsets = [0, 0, 88], sizes = [2, 8, 8], strides = [1, 1, 1]} : vector<2x8x128xf32> to vector<2x8x8xf32>
    %cst_49 = arith.constant dense<0xFF800000> : vector<2x8xf32>
    %99 = vector.multi_reduction <maximumf>, %98, %cst_49 [2] : vector<2x8x8xf32> to vector<2x8xf32>
    %100 = vector.extract_strided_slice %75 {offsets = [0, 0, 96], sizes = [2, 8, 8], strides = [1, 1, 1]} : vector<2x8x128xf32> to vector<2x8x8xf32>
    %cst_50 = arith.constant dense<0xFF800000> : vector<2x8xf32>
    %101 = vector.multi_reduction <maximumf>, %100, %cst_50 [2] : vector<2x8x8xf32> to vector<2x8xf32>
    %102 = vector.extract_strided_slice %75 {offsets = [0, 0, 104], sizes = [2, 8, 8], strides = [1, 1, 1]} : vector<2x8x128xf32> to vector<2x8x8xf32>
    %cst_51 = arith.constant dense<0xFF800000> : vector<2x8xf32>
    %103 = vector.multi_reduction <maximumf>, %102, %cst_51 [2] : vector<2x8x8xf32> to vector<2x8xf32>
    %104 = vector.extract_strided_slice %75 {offsets = [0, 0, 112], sizes = [2, 8, 8], strides = [1, 1, 1]} : vector<2x8x128xf32> to vector<2x8x8xf32>
    %cst_52 = arith.constant dense<0xFF800000> : vector<2x8xf32>
    %105 = vector.multi_reduction <maximumf>, %104, %cst_52 [2] : vector<2x8x8xf32> to vector<2x8xf32>
    %106 = vector.extract_strided_slice %75 {offsets = [0, 0, 120], sizes = [2, 8, 8], strides = [1, 1, 1]} : vector<2x8x128xf32> to vector<2x8x8xf32>
    %cst_53 = arith.constant dense<0xFF800000> : vector<2x8xf32>
    %107 = vector.multi_reduction <maximumf>, %106, %cst_53 [2] : vector<2x8x8xf32> to vector<2x8xf32>
    %108 = tpu.concatenate %77, %79, %81, %83, %85, %87, %89, %91, %93, %95, %97, %99, %101, %103, %105, %107 in 1 : vector<2x8xf32>, vector<2x8xf32>, vector<2x8xf32>, vector<2x8xf32>, vector<2x8xf32>, vector<2x8xf32>, vector<2x8xf32>, vector<2x8xf32>, vector<2x8xf32>, vector<2x8xf32>, vector<2x8xf32>, vector<2x8xf32>, vector<2x8xf32>, vector<2x8xf32>, vector<2x8xf32>, vector<2x8xf32> -> vector<2x128xf32>
    %c0_54 = arith.constant 0 : index
    %c0_55 = arith.constant 0 : index
    %109 = vector.load %arg4[%c0_54, %c0_55] : memref<128x128xf32, #tpu.memory_space<vmem>>, vector<128x128xf32>
    %cst_56 = arith.constant dense<0.000000e+00> : vector<2x128xf32>
    %110 = tpu.matmul %108, %109, %cst_56 {dimension_numbers = #tpu.dot_dimension_numbers<[1], [0], [0], [1], [0, 0, 1, 1], [], []>} : vector<2x128xf32>, vector<128x128xf32>, vector<2x128xf32> -> vector<2x128xf32>
    %c0_57 = arith.constant 0 : index
    %c0_58 = arith.constant 0 : index
    %111 = vector.load %arg5[%c0_57, %c0_58] : memref<1x128xf32, #tpu.memory_space<vmem>>, vector<1x128xf32>
    %112 = vector.broadcast %111 : vector<1x128xf32> to vector<2x128xf32>
    %113 = arith.addf %110, %112 : vector<2x128xf32>
    %114 = vector.shape_cast %113 : vector<2x128xf32> to vector<2x1x128xf32>
    %c0_59 = arith.constant 0 : index
    %c0_60 = arith.constant 0 : index
    %c0_61 = arith.constant 0 : index
    %115 = vector.load %arg6[%c0_59, %c0_60, %c0_61] : memref<2x1x128xf32, #tpu.memory_space<vmem>>, vector<2x1x128xf32>
    tpu.vector_store %arg6[%c0_59, %c0_60, %c0_61], %114 {strides = array<i32>} : memref<2x1x128xf32, #tpu.memory_space<vmem>>, vector<2x1x128xf32>,
    return
  }
  func.func @transform_0(%arg0: i32) -> (i32, i32, i32) {
    %c0_i32 = arith.constant 0 : i32
    %c0_i32_0 = arith.constant 0 : i32
    %c0_i32_1 = arith.constant 0 : i32
    return %arg0, %c0_i32, %c0_i32_0 : i32, i32, i32
  }
  func.func @transform_1(%arg0: i32) -> (i32, i32) {
    %c0_i32 = arith.constant 0 : i32
    %c0_i32_0 = arith.constant 0 : i32
    %c0_i32_1 = arith.constant 0 : i32
    return %c0_i32, %c0_i32_0 : i32, i32
  }
  func.func @transform_2(%arg0: i32) -> (i32, i32) {
    %c0_i32 = arith.constant 0 : i32
    %c0_i32_0 = arith.constant 0 : i32
    %c0_i32_1 = arith.constant 0 : i32
    return %c0_i32, %c0_i32_0 : i32, i32
  }
  func.func @transform_3(%arg0: i32) -> (i32, i32) {
    %c0_i32 = arith.constant 0 : i32
    %c0_i32_0 = arith.constant 0 : i32
    %c0_i32_1 = arith.constant 0 : i32
    return %c0_i32, %c0_i32_0 : i32, i32
  }
  func.func @transform_4(%arg0: i32) -> (i32, i32) {
    %c0_i32 = arith.constant 0 : i32
    %c0_i32_0 = arith.constant 0 : i32
    %c0_i32_1 = arith.constant 0 : i32
    return %c0_i32, %c0_i32_0 : i32, i32
  }
  func.func @transform_5(%arg0: i32) -> (i32, i32, i32) {
    %c0_i32 = arith.constant 0 : i32
    %c0_i32_0 = arith.constant 0 : i32
    %c0_i32_1 = arith.constant 0 : i32
    return %arg0, %c0_i32, %c0_i32_0 : i32, i32, i32
  }
}

</mosaic_0001>

<llo_original>
// kernel: med_smallest_forward.1
$region0: #{med_smallest_forward.1}
  #allocation0 [shape = 'u32[]', space=smem, size = 0x4, offset = 0x4, fixed_abs, tag = 'smem constant byte address 0x4 - core index']
  #allocation1 [shape = 'u32[144,128]{1,0:T(1,128)}', space=vmem, size = 0x12000, scoped, tag = 'internal scratch']
  #allocation2 [shape = 'f32[2,66,256]{2,1,0:T(8,128)}', space=vmem, size = 0x24000, scoped, tag = 'scratch operand']
  %s0 = inlined_call_operand.vmem [shape: f32[2,64,64], index: 0, kind: input, shape index: {}]
  %s1 = inlined_call_operand.vmem [shape: f32[9,128], index: 1, kind: input, shape index: {}]
  %s2 = inlined_call_operand.vmem [shape: f32[1,128], index: 2, kind: input, shape index: {}]
  %s3 = inlined_call_operand.vmem [shape: f32[128,128], index: 3, kind: input, shape index: {}]
  %s4 = inlined_call_operand.vmem [shape: f32[1,128], index: 4, kind: input, shape index: {}]
  %s5 = inlined_call_operand.hbm [shape: f32[2,1,128], index: 5, kind: output, shape index: {}]
  %s6 = sld [smem:[#allocation0]]
  $region30: #{med_smallest_forward.1} parent=0
    _
  %s8 = ssub.s32 1, %s6
  %s9 = scalar_select 0, %s8, %s6
  $region1: #{med_smallest_forward.1} parent=0
    #allocation3 [shape = 'u8[1024]{0}', space=vmem, size = 0x400, scoped, tag = 'output window, operand 0, single buffered']
    #allocation4 [shape = 's32[1]{0}', space=sflag, size = 0x4, scoped, tag = 'scoped memory for med_smallest_forward.1']
    %10 = vsyncpa [#allocation4], 0
    // Predicated region
    $region2: #{med_smallest_forward.1} parent=1 // pred_check
      _
    $region3: #{med_smallest_forward.1} parent=1 // pred_check_branch
      %12 = sbr.rel (0) target = $region5
    $region4: #{med_smallest_forward.1} parent=1 // pred_region
      _
    $region5: #{med_smallest_forward.1} parent=1 // pred_fallthru
      _
    // Predicated region
    $region6: #{med_smallest_forward.1} parent=1 // pred_check
      _
    $region7: #{med_smallest_forward.1} parent=1 // pred_check_branch
      %14 = sbr.rel (0) target = $region9
    $region8: #{med_smallest_forward.1} parent=1 // pred_region
      _
    $region9: #{med_smallest_forward.1} parent=1 // pred_fallthru
      _
    // Predicated region
    $region10: #{med_smallest_forward.1} parent=1 // pred_check
      _
    $region11: #{med_smallest_forward.1} parent=1 // pred_check_branch
      %16 = sbr.rel (0) target = $region13
    $region12: #{med_smallest_forward.1} parent=1 // pred_region
      _
    $region13: #{med_smallest_forward.1} parent=1 // pred_fallthru
      _
    // Predicated region
    $region14: #{med_smallest_forward.1} parent=1 // pred_check
      _
    $region15: #{med_smallest_forward.1} parent=1 // pred_check_branch
      %18 = sbr.rel (0) target = $region17
    $region16: #{med_smallest_forward.1} parent=1 // pred_region
      _
    $region17: #{med_smallest_forward.1} parent=1 // pred_fallthru
      _
    // Predicated region
    $region18: #{med_smallest_forward.1} parent=1 // pred_check
      _
    $region19: #{med_smallest_forward.1} parent=1 // pred_check_branch
      %20 = sbr.rel (0) target = $region21
    $region20: #{med_smallest_forward.1} parent=1 // pred_region
      _
    $region21: #{med_smallest_forward.1} parent=1 // pred_fallthru
      _
    %21 = vst [vmem:[#allocation2] sm:$0xff] 0.0
    %22 = vst [vmem:[#allocation2 + $0x8] sm:$0xff] 0.0
    %23 = vst [vmem:[#allocation2 + $0x10] sm:$0xff] 0.0
    %24 = vst [vmem:[#allocation2 + $0x18] sm:$0xff] 0.0
    %25 = vst [vmem:[#allocation2 + $0x20] sm:$0xff] 0.0
    %26 = vst [vmem:[#allocation2 + $0x28] sm:$0xff] 0.0
    %27 = vst [vmem:[#allocation2 + $0x30] sm:$0xff] 0.0
    %28 = vst [vmem:[#allocation2 + $0x38] sm:$0xff] 0.0
    %29 = vst [vmem:[#allocation2 + $0x40] sm:$0xff] 0.0
    %30 = vst [vmem:[#allocation2 + $0x48] sm:$0xff] 0.0
    %31 = vst [vmem:[#allocation2 + $0x50] sm:$0xff] 0.0
    %32 = vst [vmem:[#allocation2 + $0x58] sm:$0xff] 0.0
    %33 = vst [vmem:[#allocation2 + $0x60] sm:$0xff] 0.0
    %34 = vst [vmem:[#allocation2 + $0x68] sm:$0xff] 0.0
    %35 = vst [vmem:[#allocation2 + $0x70] sm:$0xff] 0.0
    %36 = vst [vmem:[#allocation2 + $0x78] sm:$0xff] 0.0
    %37 = vst [vmem:[#allocation2 + $0x80] sm:$0x3] 0.0
    %38 = vst [vmem:[#allocation2 + $0x88] sm:$0x3] 0.0
    %39 = vst [vmem:[#allocation2 + $0x90] sm:$0xff] 0.0
    %40 = vst [vmem:[#allocation2 + $0x98] sm:$0xff] 0.0
    %41 = vst [vmem:[#allocation2 + $0xa0] sm:$0xff] 0.0
    %42 = vst [vmem:[#allocation2 + $0xa8] sm:$0xff] 0.0
    %43 = vst [vmem:[#allocation2 + $0xb0] sm:$0xff] 0.0
    %44 = vst [vmem:[#allocation2 + $0xb8] sm:$0xff] 0.0
    %45 = vst [vmem:[#allocation2 + $0xc0] sm:$0xff] 0.0
    %46 = vst [vmem:[#allocation2 + $0xc8] sm:$0xff] 0.0
    %47 = vst [vmem:[#allocation2 + $0xd0] sm:$0xff] 0.0
    %48 = vst [vmem:[#allocation2 + $0xd8] sm:$0xff] 0.0
    %49 = vst [vmem:[#allocation2 + $0xe0] sm:$0xff] 0.0
    %50 = vst [vmem:[#allocation2 + $0xe8] sm:$0xff] 0.0
    %51 = vst [vmem:[#allocation2 + $0xf0] sm:$0xff] 0.0
    %52 = vst [vmem:[#allocation2 + $0xf8] sm:$0xff] 0.0
    %53 = vst [vmem:[#allocation2 + $0x100] sm:$0xff] 0.0
    %54 = vst [vmem:[#allocation2 + $0x108] sm:$0xff] 0.0
    %55 = vst [vmem:[#allocation2 + $0x110] sm:$0x3] 0.0
    %56 = vst [vmem:[#allocation2 + $0x118] sm:$0x3] 0.0
    %v57 = vld [vmem:[%s0] sm:$0xff]
    %v58 = vld [vmem:[%s0 + $0x8] sm:$0xff]
    %v59 = vld [vmem:[%s0 + $0x10] sm:$0xff]
    %v60 = vld [vmem:[%s0 + $0x18] sm:$0xff]
    %v61 = vld [vmem:[%s0 + $0x20] sm:$0xff]
    %v62 = vld [vmem:[%s0 + $0x28] sm:$0xff]
    %v63 = vld [vmem:[%s0 + $0x30] sm:$0xff]
    %v64 = vld [vmem:[%s0 + $0x38] sm:$0xff]
    %v65 = vld [vmem:[%s0 + $0x40] sm:$0xff]
    %v66 = vld [vmem:[%s0 + $0x48] sm:$0xff]
    %v67 = vld [vmem:[%s0 + $0x50] sm:$0xff]
    %v68 = vld [vmem:[%s0 + $0x58] sm:$0xff]
    %v69 = vld [vmem:[%s0 + $0x60] sm:$0xff]
    %v70 = vld [vmem:[%s0 + $0x68] sm:$0xff]
    %v71 = vld [vmem:[%s0 + $0x70] sm:$0xff]
    %v72 = vld [vmem:[%s0 + $0x78] sm:$0xff]
    %vm89 = vcmask 1040384
    %v90 = vrot.slane %v57, 7
    %v91 = vrot.slane %v58, 7
    %v92 = vsel %vm89, %v90, %v91
    %v93 = vrot.slane %v59, 7
    %v94 = vsel %vm89, %v91, %v93
    %v95 = vrot.slane %v60, 7
    %v96 = vsel %vm89, %v93, %v95
    %v97 = vrot.slane %v61, 7
    %v98 = vsel %vm89, %v95, %v97
    %v99 = vrot.slane %v62, 7
    %v100 = vsel %vm89, %v97, %v99
    %v101 = vrot.slane %v63, 7
    %v102 = vsel %vm89, %v99, %v101
    %v103 = vrot.slane %v64, 7
    %v104 = vsel %vm89, %v101, %v103
    %v105 = vrot.slane %v65, 7
    %v106 = vrot.slane %v66, 7
    %v107 = vsel %vm89, %v105, %v106
    %v108 = vrot.slane %v67, 7
    %v109 = vsel %vm89, %v106, %v108
    %v110 = vrot.slane %v68, 7
    %v111 = vsel %vm89, %v108, %v110
    %v112 = vrot.slane %v69, 7
    %v113 = vsel %vm89, %v110, %v112
    %v114 = vrot.slane %v70, 7
    %v115 = vsel %vm89, %v112, %v114
    %v116 = vrot.slane %v71, 7
    %v117 = vsel %vm89, %v114, %v116
    %v118 = vrot.slane %v72, 7
    %v119 = vsel %vm89, %v116, %v118
    %120 = vrot.lane.b32.xlu0 %v90, 64
    %v121 = vpop.permute.xlu0 %120
    %122 = vrot.lane.b32.xlu0 %v92, 64
    %v123 = vpop.permute.xlu0 %122
    %124 = vrot.lane.b32.xlu0 %v94, 64
    %v125 = vpop.permute.xlu0 %124
    %126 = vrot.lane.b32.xlu0 %v96, 64
    %v127 = vpop.permute.xlu0 %126
    %128 = vrot.lane.b32.xlu0 %v98, 64
    %v129 = vpop.permute.xlu0 %128
    %130 = vrot.lane.b32.xlu0 %v100, 64
    %v131 = vpop.permute.xlu0 %130
    %132 = vrot.lane.b32.xlu0 %v102, 64
    %v133 = vpop.permute.xlu0 %132
    %134 = vrot.lane.b32.xlu0 %v104, 64
    %v135 = vpop.permute.xlu0 %134
    %136 = vrot.lane.b32.xlu0 %v103, 64
    %v137 = vpop.permute.xlu0 %136
    %138 = vrot.lane.b32.xlu0 %v105, 64
    %v139 = vpop.permute.xlu0 %138
    %140 = vrot.lane.b32.xlu0 %v107, 64
    %v141 = vpop.permute.xlu0 %140
    %142 = vrot.lane.b32.xlu0 %v109, 64
    %v143 = vpop.permute.xlu0 %142
    %144 = vrot.lane.b32.xlu0 %v111, 64
    %v145 = vpop.permute.xlu0 %144
    %146 = vrot.lane.b32.xlu0 %v113, 64
    %v147 = vpop.permute.xlu0 %146
    %148 = vrot.lane.b32.xlu0 %v115, 64
    %v149 = vpop.permute.xlu0 %148
    %150 = vrot.lane.b32.xlu0 %v117, 64
    %v151 = vpop.permute.xlu0 %150
    %152 = vrot.lane.b32.xlu0 %v119, 64
    %v153 = vpop.permute.xlu0 %152
    %154 = vrot.lane.b32.xlu0 %v118, 64
    %v155 = vpop.permute.xlu0 %154
    %vm174 = vcmask 1048065
    %175 = vst.msk [vmem:[#allocation2] sm:$0xfe] %vm174, %v121
    %vm176 = vcmask 1048064
    %177 = vst.msk [vmem:[#allocation2 + $0x10] sm:$0xff] %vm176, %v123
    %178 = vst.msk [vmem:[#allocation2 + $0x20] sm:$0xff] %vm176, %v125
    %179 = vst.msk [vmem:[#allocation2 + $0x30] sm:$0xff] %vm176, %v127
    %180 = vst.msk [vmem:[#allocation2 + $0x40] sm:$0xff] %vm176, %v129
    %181 = vst.msk [vmem:[#allocation2 + $0x50] sm:$0xff] %vm176, %v131
    %182 = vst.msk [vmem:[#allocation2 + $0x60] sm:$0xff] %vm176, %v133
    %183 = vst.msk [vmem:[#allocation2 + $0x70] sm:$0xff] %vm176, %v135
    %vm184 = vcmask 1040896
    %185 = vst.msk [vmem:[#allocation2 + $0x80] sm:$0x1] %vm184, %v137
    %186 = vst.msk [vmem:[#allocation2 + $0x90] sm:$0xfe] %vm174, %v139
    %187 = vst.msk [vmem:[#allocation2 + $0xa0] sm:$0xff] %vm176, %v141
    %188 = vst.msk [vmem:[#allocation2 + $0xb0] sm:$0xff] %vm176, %v143
    %189 = vst.msk [vmem:[#allocation2 + $0xc0] sm:$0xff] %vm176, %v145
    %190 = vst.msk [vmem:[#allocation2 + $0xd0] sm:$0xff] %vm176, %v147
    %191 = vst.msk [vmem:[#allocation2 + $0xe0] sm:$0xff] %vm176, %v149
    %192 = vst.msk [vmem:[#allocation2 + $0xf0] sm:$0xff] %vm176, %v151
    %193 = vst.msk [vmem:[#allocation2 + $0x100] sm:$0xff] %vm176, %v153
    %194 = vst.msk [vmem:[#allocation2 + $0x110] sm:$0x1] %vm184, %v155
    %vm213 = vcmask 523265
    %214 = vst.msk [vmem:[#allocation2 + $0x8] sm:$0xfe] %vm213, %v90
    %vm215 = vcmask 523264
    %216 = vst.msk [vmem:[#allocation2 + $0x18] sm:$0xff] %vm215, %v92
    %217 = vst.msk [vmem:[#allocation2 + $0x28] sm:$0xff] %vm215, %v94
    %218 = vst.msk [vmem:[#allocation2 + $0x38] sm:$0xff] %vm215, %v96
    %219 = vst.msk [vmem:[#allocation2 + $0x48] sm:$0xff] %vm215, %v98
    %220 = vst.msk [vmem:[#allocation2 + $0x58] sm:$0xff] %vm215, %v100
    %221 = vst.msk [vmem:[#allocation2 + $0x68] sm:$0xff] %vm215, %v102
    %222 = vst.msk [vmem:[#allocation2 + $0x78] sm:$0xff] %vm215, %v104
    %vm223 = vcmask 516096
    %224 = vst.msk [vmem:[#allocation2 + $0x88] sm:$0x1] %vm223, %v103
    %225 = vst.msk [vmem:[#allocation2 + $0x98] sm:$0xfe] %vm213, %v105
    %226 = vst.msk [vmem:[#allocation2 + $0xa8] sm:$0xff] %vm215, %v107
    %227 = vst.msk [vmem:[#allocation2 + $0xb8] sm:$0xff] %vm215, %v109
    %228 = vst.msk [vmem:[#allocation2 + $0xc8] sm:$0xff] %vm215, %v111
    %229 = vst.msk [vmem:[#allocation2 + $0xd8] sm:$0xff] %vm215, %v113
    %230 = vst.msk [vmem:[#allocation2 + $0xe8] sm:$0xff] %vm215, %v115
    %231 = vst.msk [vmem:[#allocation2 + $0xf8] sm:$0xff] %vm215, %v117
    %232 = vst.msk [vmem:[#allocation2 + $0x108] sm:$0xff] %vm215, %v119
    %233 = vst.msk [vmem:[#allocation2 + $0x118] sm:$0x1] %vm223, %v118
    %v234 = vld [vmem:[%s1] sm:$0xff]
    %v235 = vld [vmem:[%s1 + $0x8] sm:$0x1]
    %v236 = vld [vmem:[#allocation2] sm:$0xff]
    %v237 = vld [vmem:[#allocation2 + $0x8] sm:$0xff]
    %v238 = vld [vmem:[#allocation2 + $0x10] sm:$0xff]
    %v239 = vld [vmem:[#allocation2 + $0x18] sm:$0xff]
    %v240 = vld [vmem:[#allocation2 + $0x20] sm:$0xff]
    %v241 = vld [vmem:[#allocation2 + $0x28] sm:$0xff]
    %v242 = vld [vmem:[#allocation2 + $0x30] sm:$0xff]
    %v243 = vld [vmem:[#allocation2 + $0x38] sm:$0xff]
    %v244 = vld [vmem:[#allocation2 + $0x40] sm:$0xff]
    %v245 = vld [vmem:[#allocation2 + $0x48] sm:$0xff]
    %v246 = vld [vmem:[#allocation2 + $0x50] sm:$0xff]
    %v247 = vld [vmem:[#allocation2 + $0x58] sm:$0xff]
    %v248 = vld [vmem:[#allocation2 + $0x60] sm:$0xff]
    %v249 = vld [vmem:[#allocation2 + $0x68] sm:$0xff]
    %v250 = vld [vmem:[#allocation2 + $0x70] sm:$0xff]
    %v251 = vld [vmem:[#allocation2 + $0x78] sm:$0xff]
    %v252 = vld [vmem:[#allocation2 + $0x90] sm:$0xff]
    %v253 = vld [vmem:[#allocation2 + $0x98] sm:$0xff]
    %v254 = vld [vmem:[#allocation2 + $0xa0] sm:$0xff]
    %v255 = vld [vmem:[#allocation2 + $0xa8] sm:$0xff]
    %v256 = vld [vmem:[#allocation2 + $0xb0] sm:$0xff]
    %v257 = vld [vmem:[#allocation2 + $0xb8] sm:$0xff]
    %v258 = vld [vmem:[#allocation2 + $0xc0] sm:$0xff]
    %v259 = vld [vmem:[#allocation2 + $0xc8] sm:$0xff]
    %v260 = vld [vmem:[#allocation2 + $0xd0] sm:$0xff]
    %v261 = vld [vmem:[#allocation2 + $0xd8] sm:$0xff]
    %v262 = vld [vmem:[#allocation2 + $0xe0] sm:$0xff]
    %v263 = vld [vmem:[#allocation2 + $0xe8] sm:$0xff]
    %v264 = vld [vmem:[#allocation2 + $0xf0] sm:$0xff]
    %v265 = vld [vmem:[#allocation2 + $0xf8] sm:$0xff]
    %v266 = vld [vmem:[#allocation2 + $0x100] sm:$0xff]
    %v267 = vld [vmem:[#allocation2 + $0x108] sm:$0xff]
    %v268 = vlaneseq
    %v269 = vshrl.u32 %v268, 7
    %v270 = vsub.s32 0, %v269
    %v271 = vrot.slane %v234, %v270
    %304 = vrot.lane.b32.xlu0 %v236, 65
    %v305 = vpop.permute.xlu0 %304
    %306 = vrot.lane.b32.xlu0 %v237, 65
    %v307 = vpop.permute.xlu0 %306
    %308 = vrot.lane.b32.xlu0 %v238, 65
    %v309 = vpop.permute.xlu0 %308
    %310 = vrot.lane.b32.xlu0 %v239, 65
    %v311 = vpop.permute.xlu0 %310
    %312 = vrot.lane.b32.xlu0 %v240, 65
    %v313 = vpop.permute.xlu0 %312
    %314 = vrot.lane.b32.xlu0 %v241, 65
    %v315 = vpop.permute.xlu0 %314
    %316 = vrot.lane.b32.xlu0 %v242, 65
    %v317 = vpop.permute.xlu0 %316
    %318 = vrot.lane.b32.xlu0 %v243, 65
    %v319 = vpop.permute.xlu0 %318
    %320 = vrot.lane.b32.xlu0 %v244, 65
    %v321 = vpop.permute.xlu0 %320
    %322 = vrot.lane.b32.xlu0 %v245, 65
    %v323 = vpop.permute.xlu0 %322
    %324 = vrot.lane.b32.xlu0 %v246, 65
    %v325 = vpop.permute.xlu0 %324
    %326 = vrot.lane.b32.xlu0 %v247, 65
    %v327 = vpop.permute.xlu0 %326
    %328 = vrot.lane.b32.xlu0 %v248, 65
    %v329 = vpop.permute.xlu0 %328
    %330 = vrot.lane.b32.xlu0 %v249, 65
    %v331 = vpop.permute.xlu0 %330
    %332 = vrot.lane.b32.xlu0 %v250, 65
    %v333 = vpop.permute.xlu0 %332
    %334 = vrot.lane.b32.xlu0 %v251, 65
    %v335 = vpop.permute.xlu0 %334
    %336 = vrot.lane.b32.xlu0 %v252, 65
    %v337 = vpop.permute.xlu0 %336
    %338 = vrot.lane.b32.xlu0 %v253, 65
    %v339 = vpop.permute.xlu0 %338
    %340 = vrot.lane.b32.xlu0 %v254, 65
    %v341 = vpop.permute.xlu0 %340
    %342 = vrot.lane.b32.xlu0 %v255, 65
    %v343 = vpop.permute.xlu0 %342
    %344 = vrot.lane.b32.xlu0 %v256, 65
    %v345 = vpop.permute.xlu0 %344
    %346 = vrot.lane.b32.xlu0 %v257, 65
    %v347 = vpop.permute.xlu0 %346
    %348 = vrot.lane.b32.xlu0 %v258, 65
    %v349 = vpop.permute.xlu0 %348
    %350 = vrot.lane.b32.xlu0 %v259, 65
    %v351 = vpop.permute.xlu0 %350
    %352 = vrot.lane.b32.xlu0 %v260, 65
    %v353 = vpop.permute.xlu0 %352
    %354 = vrot.lane.b32.xlu0 %v261, 65
    %v355 = vpop.permute.xlu0 %354
    %356 = vrot.lane.b32.xlu0 %v262, 65
    %v357 = vpop.permute.xlu0 %356
    %358 = vrot.lane.b32.xlu0 %v263, 65
    %v359 = vpop.permute.xlu0 %358
    %360 = vrot.lane.b32.xlu0 %v264, 65
    %v361 = vpop.permute.xlu0 %360
    %362 = vrot.lane.b32.xlu0 %v265, 65
    %v363 = vpop.permute.xlu0 %362
    %364 = vrot.lane.b32.xlu0 %v266, 65
    %v365 = vpop.permute.xlu0 %364
    %366 = vrot.lane.b32.xlu0 %v267, 65
    %v367 = vpop.permute.xlu0 %366
    %vm368 = vcmask 531456
    %v369 = vsel %vm368, %v305, %v307
    %v370 = vsel %vm368, %v309, %v311
    %v371 = vsel %vm368, %v313, %v315
    %v372 = vsel %vm368, %v317, %v319
    %v373 = vsel %vm368, %v321, %v323
    %v374 = vsel %vm368, %v325, %v327
    %v375 = vsel %vm368, %v329, %v331
    %v376 = vsel %vm368, %v333, %v335
    %v377 = vsel %vm368, %v337, %v339
    %v378 = vsel %vm368, %v341, %v343
    %v379 = vsel %vm368, %v345, %v347
    %v380 = vsel %vm368, %v349, %v351
    %v381 = vsel %vm368, %v353, %v355
    %v382 = vsel %vm368, %v357, %v359
    %v383 = vsel %vm368, %v361, %v363
    %v384 = vsel %vm368, %v365, %v367
    %v401 = vmul.f32 %v271, %v369
    %v402 = vmul.f32 %v271, %v370
    %v403 = vmul.f32 %v271, %v371
    %v404 = vmul.f32 %v271, %v372
    %v405 = vmul.f32 %v271, %v373
    %v406 = vmul.f32 %v271, %v374
    %v407 = vmul.f32 %v271, %v375
    %v408 = vmul.f32 %v271, %v376
    %v409 = vmul.f32 %v271, %v377
    %v410 = vmul.f32 %v271, %v378
    %v411 = vmul.f32 %v271, %v379
    %v412 = vmul.f32 %v271, %v380
    %v413 = vmul.f32 %v271, %v381
    %v414 = vmul.f32 %v271, %v382
    %v415 = vmul.f32 %v271, %v383
    %v416 = vmul.f32 %v271, %v384
    %v417 = vlaneseq
    %v418 = vshrl.u32 %v417, 7
    %v419 = vsub.s32 1, %v418
    %v420 = vrot.slane %v234, %v419
    %421 = vrot.lane.b32.xlu0 %v236, 64
    %v422 = vpop.permute.xlu0 %421
    %423 = vrot.lane.b32.xlu0 %v237, 64
    %v424 = vpop.permute.xlu0 %423
    %425 = vrot.lane.b32.xlu0 %v238, 64
    %v426 = vpop.permute.xlu0 %425
    %427 = vrot.lane.b32.xlu0 %v239, 64
    %v428 = vpop.permute.xlu0 %427
    %429 = vrot.lane.b32.xlu0 %v240, 64
    %v430 = vpop.permute.xlu0 %429
    %431 = vrot.lane.b32.xlu0 %v241, 64
    %v432 = vpop.permute.xlu0 %431
    %433 = vrot.lane.b32.xlu0 %v242, 64
    %v434 = vpop.permute.xlu0 %433
    %435 = vrot.lane.b32.xlu0 %v243, 64
    %v436 = vpop.permute.xlu0 %435
    %437 = vrot.lane.b32.xlu0 %v244, 64
    %v438 = vpop.permute.xlu0 %437
    %439 = vrot.lane.b32.xlu0 %v245, 64
    %v440 = vpop.permute.xlu0 %439
    %441 = vrot.lane.b32.xlu0 %v246, 64
    %v442 = vpop.permute.xlu0 %441
    %443 = vrot.lane.b32.xlu0 %v247, 64
    %v444 = vpop.permute.xlu0 %443
    %445 = vrot.lane.b32.xlu0 %v248, 64
    %v446 = vpop.permute.xlu0 %445
    %447 = vrot.lane.b32.xlu0 %v249, 64
    %v448 = vpop.permute.xlu0 %447
    %449 = vrot.lane.b32.xlu0 %v250, 64
    %v450 = vpop.permute.xlu0 %449
    %451 = vrot.lane.b32.xlu0 %v251, 64
    %v452 = vpop.permute.xlu0 %451
    %453 = vrot.lane.b32.xlu0 %v252, 64
    %v454 = vpop.permute.xlu0 %453
    %455 = vrot.lane.b32.xlu0 %v253, 64
    %v456 = vpop.permute.xlu0 %455
    %457 = vrot.lane.b32.xlu0 %v254, 64
    %v458 = vpop.permute.xlu0 %457
    %459 = vrot.lane.b32.xlu0 %v255, 64
    %v460 = vpop.permute.xlu0 %459
    %461 = vrot.lane.b32.xlu0 %v256, 64
    %v462 = vpop.permute.xlu0 %461
    %463 = vrot.lane.b32.xlu0 %v257, 64
    %v464 = vpop.permute.xlu0 %463
    %465 = vrot.lane.b32.xlu0 %v258, 64
    %v466 = vpop.permute.xlu0 %465
    %467 = vrot.lane.b32.xlu0 %v259, 64
    %v468 = vpop.permute.xlu0 %467
    %469 = vrot.lane.b32.xlu0 %v260, 64
    %v470 = vpop.permute.xlu0 %469
    %471 = vrot.lane.b32.xlu0 %v261, 64
    %v472 = vpop.permute.xlu0 %471
    %473 = vrot.lane.b32.xlu0 %v262, 64
    %v474 = vpop.permute.xlu0 %473
    %475 = vrot.lane.b32.xlu0 %v263, 64
    %v476 = vpop.permute.xlu0 %475
    %477 = vrot.lane.b32.xlu0 %v264, 64
    %v478 = vpop.permute.xlu0 %477
    %479 = vrot.lane.b32.xlu0 %v265, 64
    %v480 = vpop.permute.xlu0 %479
    %481 = vrot.lane.b32.xlu0 %v266, 64
    %v482 = vpop.permute.xlu0 %481
    %483 = vrot.lane.b32.xlu0 %v267, 64
    %v484 = vpop.permute.xlu0 %483
    %v485 = vsel %vm215, %v422, %v424
    %v486 = vsel %vm215, %v426, %v428
    %v487 = vsel %vm215, %v430, %v432
    %v488 = vsel %vm215, %v434, %v436
    %v489 = vsel %vm215, %v438, %v440
    %v490 = vsel %vm215, %v442, %v444
    %v491 = vsel %vm215, %v446, %v448
    %v492 = vsel %vm215, %v450, %v452
    %v493 = vsel %vm215, %v454, %v456
    %v494 = vsel %vm215, %v458, %v460
    %v495 = vsel %vm215, %v462, %v464
    %v496 = vsel %vm215, %v466, %v468
    %v497 = vsel %vm215, %v470, %v472
    %v498 = vsel %vm215, %v474, %v476
    %v499 = vsel %vm215, %v478, %v480
    %v500 = vsel %vm215, %v482, %v484
    %v517 = vmul.f32 %v420, %v485
    %v518 = vmul.f32 %v420, %v486
    %v519 = vmul.f32 %v420, %v487
    %v520 = vmul.f32 %v420, %v488
    %v521 = vmul.f32 %v420, %v489
    %v522 = vmul.f32 %v420, %v490
    %v523 = vmul.f32 %v420, %v491
    %v524 = vmul.f32 %v420, %v492
    %v525 = vmul.f32 %v420, %v493
    %v526 = vmul.f32 %v420, %v494
    %v527 = vmul.f32 %v420, %v495
    %v528 = vmul.f32 %v420, %v496
    %v529 = vmul.f32 %v420, %v497
    %v530 = vmul.f32 %v420, %v498
    %v531 = vmul.f32 %v420, %v499
    %v532 = vmul.f32 %v420, %v500
    %v533 = vadd.f32 %v401, %v517
    %v534 = vadd.f32 %v402, %v518
    %v535 = vadd.f32 %v403, %v519
    %v536 = vadd.f32 %v404, %v520
    %v537 = vadd.f32 %v405, %v521
    %v538 = vadd.f32 %v406, %v522
    %v539 = vadd.f32 %v407, %v523
    %v540 = vadd.f32 %v408, %v524
    %v541 = vadd.f32 %v409, %v525
    %v542 = vadd.f32 %v410, %v526
    %v543 = vadd.f32 %v411, %v527
    %v544 = vadd.f32 %v412, %v528
    %v545 = vadd.f32 %v413, %v529
    %v546 = vadd.f32 %v414, %v530
    %v547 = vadd.f32 %v415, %v531
    %v548 = vadd.f32 %v416, %v532
    %v549 = vlaneseq
    %v550 = vshrl.u32 %v549, 7
    %v551 = vsub.s32 2, %v550
    %v552 = vrot.slane %v234, %v551
    %553 = vrot.lane.b32.xlu0 %v236, 63
    %v554 = vpop.permute.xlu0 %553
    %555 = vrot.lane.b32.xlu0 %v237, 63
    %v556 = vpop.permute.xlu0 %555
    %557 = vrot.lane.b32.xlu0 %v238, 63
    %v558 = vpop.permute.xlu0 %557
    %559 = vrot.lane.b32.xlu0 %v239, 63
    %v560 = vpop.permute.xlu0 %559
    %561 = vrot.lane.b32.xlu0 %v240, 63
    %v562 = vpop.permute.xlu0 %561
    %563 = vrot.lane.b32.xlu0 %v241, 63
    %v564 = vpop.permute.xlu0 %563
    %565 = vrot.lane.b32.xlu0 %v242, 63
    %v566 = vpop.permute.xlu0 %565
    %567 = vrot.lane.b32.xlu0 %v243, 63
    %v568 = vpop.permute.xlu0 %567
    %569 = vrot.lane.b32.xlu0 %v244, 63
    %v570 = vpop.permute.xlu0 %569
    %571 = vrot.lane.b32.xlu0 %v245, 63
    %v572 = vpop.permute.xlu0 %571
    %573 = vrot.lane.b32.xlu0 %v246, 63
    %v574 = vpop.permute.xlu0 %573
    %575 = vrot.lane.b32.xlu0 %v247, 63
    %v576 = vpop.permute.xlu0 %575
    %577 = vrot.lane.b32.xlu0 %v248, 63
    %v578 = vpop.permute.xlu0 %577
    %579 = vrot.lane.b32.xlu0 %v249, 63
    %v580 = vpop.permute.xlu0 %579
    %581 = vrot.lane.b32.xlu0 %v250, 63
    %v582 = vpop.permute.xlu0 %581
    %583 = vrot.lane.b32.xlu0 %v251, 63
    %v584 = vpop.permute.xlu0 %583
    %585 = vrot.lane.b32.xlu0 %v252, 63
    %v586 = vpop.permute.xlu0 %585
    %587 = vrot.lane.b32.xlu0 %v253, 63
    %v588 = vpop.permute.xlu0 %587
    %589 = vrot.lane.b32.xlu0 %v254, 63
    %v590 = vpop.permute.xlu0 %589
    %591 = vrot.lane.b32.xlu0 %v255, 63
    %v592 = vpop.permute.xlu0 %591
    %593 = vrot.lane.b32.xlu0 %v256, 63
    %v594 = vpop.permute.xlu0 %593
    %595 = vrot.lane.b32.xlu0 %v257, 63
    %v596 = vpop.permute.xlu0 %595
    %597 = vrot.lane.b32.xlu0 %v258, 63
    %v598 = vpop.permute.xlu0 %597
    %599 = vrot.lane.b32.xlu0 %v259, 63
    %v600 = vpop.permute.xlu0 %599
    %601 = vrot.lane.b32.xlu0 %v260, 63
    %v602 = vpop.permute.xlu0 %601
    %603 = vrot.lane.b32.xlu0 %v261, 63
    %v604 = vpop.permute.xlu0 %603
    %605 = vrot.lane.b32.xlu0 %v262, 63
    %v606 = vpop.permute.xlu0 %605
    %607 = vrot.lane.b32.xlu0 %v263, 63
    %v608 = vpop.permute.xlu0 %607
    %609 = vrot.lane.b32.xlu0 %v264, 63
    %v610 = vpop.permute.xlu0 %609
    %611 = vrot.lane.b32.xlu0 %v265, 63
    %v612 = vpop.permute.xlu0 %611
    %613 = vrot.lane.b32.xlu0 %v266, 63
    %v614 = vpop.permute.xlu0 %613
    %615 = vrot.lane.b32.xlu0 %v267, 63
    %v616 = vpop.permute.xlu0 %615
    %vm617 = vcmask 515072
    %v618 = vsel %vm617, %v554, %v556
    %v619 = vsel %vm617, %v558, %v560
    %v620 = vsel %vm617, %v562, %v564
    %v621 = vsel %vm617, %v566, %v568
    %v622 = vsel %vm617, %v570, %v572
    %v623 = vsel %vm617, %v574, %v576
    %v624 = vsel %vm617, %v578, %v580
    %v625 = vsel %vm617, %v582, %v584
    %v626 = vsel %vm617, %v586, %v588
    %v627 = vsel %vm617, %v590, %v592
    %v628 = vsel %vm617, %v594, %v596
    %v629 = vsel %vm617, %v598, %v600
    %v630 = vsel %vm617, %v602, %v604
    %v631 = vsel %vm617, %v606, %v608
    %v632 = vsel %vm617, %v610, %v612
    %v633 = vsel %vm617, %v614, %v616
    %v650 = vmul.f32 %v552, %v618
    %v651 = vmul.f32 %v552, %v619
    %v652 = vmul.f32 %v552, %v620
    %v653 = vmul.f32 %v552, %v621
    %v654 = vmul.f32 %v552, %v622
    %v655 = vmul.f32 %v552, %v623
    %v656 = vmul.f32 %v552, %v624
    %v657 = vmul.f32 %v552, %v625
    %v658 = vmul.f32 %v552, %v626
    %v659 = vmul.f32 %v552, %v627
    %v660 = vmul.f32 %v552, %v628
    %v661 = vmul.f32 %v552, %v629
    %v662 = vmul.f32 %v552, %v630
    %v663 = vmul.f32 %v552, %v631
    %v664 = vmul.f32 %v552, %v632
    %v665 = vmul.f32 %v552, %v633
    %v666 = vadd.f32 %v533, %v650
    %v667 = vadd.f32 %v534, %v651
    %v668 = vadd.f32 %v535, %v652
    %v669 = vadd.f32 %v536, %v653
    %v670 = vadd.f32 %v537, %v654
    %v671 = vadd.f32 %v538, %v655
    %v672 = vadd.f32 %v539, %v656
    %v673 = vadd.f32 %v540, %v657
    %v674 = vadd.f32 %v541, %v658
    %v675 = vadd.f32 %v542, %v659
    %v676 = vadd.f32 %v543, %v660
    %v677 = vadd.f32 %v544, %v661
    %v678 = vadd.f32 %v545, %v662
    %v679 = vadd.f32 %v546, %v663
    %v680 = vadd.f32 %v547, %v664
    %v681 = vadd.f32 %v548, %v665
    %v682 = vld [vmem:[#allocation2] sm:$0xfe]
    %v683 = vld [vmem:[#allocation2 + $0x8] sm:$0xfe]
    %v684 = vld [vmem:[#allocation2 + $0x80] sm:$0x1]
    %v685 = vld [vmem:[#allocation2 + $0x88] sm:$0x1]
    %v686 = vld [vmem:[#allocation2 + $0x90] sm:$0xfe]
    %v687 = vld [vmem:[#allocation2 + $0x98] sm:$0xfe]
    %v688 = vld [vmem:[#allocation2 + $0x110] sm:$0x1]
    %v689 = vld [vmem:[#allocation2 + $0x118] sm:$0x1]
    %v690 = vlaneseq
    %v691 = vshrl.u32 %v690, 7
    %v692 = vsub.s32 3, %v691
    %v693 = vrot.slane %v234, %v692
    %vm702 = vcmask 1046528
    %v703 = vrot.slane %v682, 1
    %v704 = vrot.slane %v238, 1
    %v705 = vsel %vm702, %v703, %v704
    %v706 = vrot.slane %v683, 1
    %v707 = vrot.slane %v239, 1
    %v708 = vsel %vm702, %v706, %v707
    %v709 = vrot.slane %v240, 1
    %v710 = vsel %vm702, %v704, %v709
    %v711 = vrot.slane %v241, 1
    %v712 = vsel %vm702, %v707, %v711
    %v713 = vrot.slane %v242, 1
    %v714 = vsel %vm702, %v709, %v713
    %v715 = vrot.slane %v243, 1
    %v716 = vsel %vm702, %v711, %v715
    %v717 = vrot.slane %v244, 1
    %v718 = vsel %vm702, %v713, %v717
    %v719 = vrot.slane %v245, 1
    %v720 = vsel %vm702, %v715, %v719
    %v721 = vrot.slane %v246, 1
    %v722 = vsel %vm702, %v717, %v721
    %v723 = vrot.slane %v247, 1
    %v724 = vsel %vm702, %v719, %v723
    %v725 = vrot.slane %v248, 1
    %v726 = vsel %vm702, %v721, %v725
    %v727 = vrot.slane %v249, 1
    %v728 = vsel %vm702, %v723, %v727
    %v729 = vrot.slane %v250, 1
    %v730 = vsel %vm702, %v725, %v729
    %v731 = vrot.slane %v251, 1
    %v732 = vsel %vm702, %v727, %v731
    %v733 = vrot.slane %v684, 1
    %v734 = vsel %vm702, %v729, %v733
    %v735 = vrot.slane %v685, 1
    %v736 = vsel %vm702, %v731, %v735
    %v737 = vrot.slane %v686, 1
    %v738 = vrot.slane %v254, 1
    %v739 = vsel %vm702, %v737, %v738
    %v740 = vrot.slane %v687, 1
    %v741 = vrot.slane %v255, 1
    %v742 = vsel %vm702, %v740, %v741
    %v743 = vrot.slane %v256, 1
    %v744 = vsel %vm702, %v738, %v743
    %v745 = vrot.slane %v257, 1
    %v746 = vsel %vm702, %v741, %v745
    %v747 = vrot.slane %v258, 1
    %v748 = vsel %vm702, %v743, %v747
    %v749 = vrot.slane %v259, 1
    %v750 = vsel %vm702, %v745, %v749
    %v751 = vrot.slane %v260, 1
    %v752 = vsel %vm702, %v747, %v751
    %v753 = vrot.slane %v261, 1
    %v754 = vsel %vm702, %v749, %v753
    %v755 = vrot.slane %v262, 1
    %v756 = vsel %vm702, %v751, %v755
    %v757 = vrot.slane %v263, 1
    %v758 = vsel %vm702, %v753, %v757
    %v759 = vrot.slane %v264, 1
    %v760 = vsel %vm702, %v755, %v759
    %v761 = vrot.slane %v265, 1
    %v762 = vsel %vm702, %v757, %v761
    %v763 = vrot.slane %v266, 1
    %v764 = vsel %vm702, %v759, %v763
    %v765 = vrot.slane %v267, 1
    %v766 = vsel %vm702, %v761, %v765
    %v767 = vrot.slane %v688, 1
    %v768 = vsel %vm702, %v763, %v767
    %v769 = vrot.slane %v689, 1
    %v770 = vsel %vm702, %v765, %v769
    %771 = vrot.lane.b32.xlu0 %v705, 65
    %v772 = vpop.permute.xlu0 %771
    %773 = vrot.lane.b32.xlu0 %v708, 65
    %v774 = vpop.permute.xlu0 %773
    %775 = vrot.lane.b32.xlu0 %v710, 65
    %v776 = vpop.permute.xlu0 %775
    %777 = vrot.lane.b32.xlu0 %v712, 65
    %v778 = vpop.permute.xlu0 %777
    %779 = vrot.lane.b32.xlu0 %v714, 65
    %v780 = vpop.permute.xlu0 %779
    %781 = vrot.lane.b32.xlu0 %v716, 65
    %v782 = vpop.permute.xlu0 %781
    %783 = vrot.lane.b32.xlu0 %v718, 65
    %v784 = vpop.permute.xlu0 %783
    %785 = vrot.lane.b32.xlu0 %v720, 65
    %v786 = vpop.permute.xlu0 %785
    %787 = vrot.lane.b32.xlu0 %v722, 65
    %v788 = vpop.permute.xlu0 %787
    %789 = vrot.lane.b32.xlu0 %v724, 65
    %v790 = vpop.permute.xlu0 %789
    %791 = vrot.lane.b32.xlu0 %v726, 65
    %v792 = vpop.permute.xlu0 %791
    %793 = vrot.lane.b32.xlu0 %v728, 65
    %v794 = vpop.permute.xlu0 %793
    %795 = vrot.lane.b32.xlu0 %v730, 65
    %v796 = vpop.permute.xlu0 %795
    %797 = vrot.lane.b32.xlu0 %v732, 65
    %v798 = vpop.permute.xlu0 %797
    %799 = vrot.lane.b32.xlu0 %v734, 65
    %v800 = vpop.permute.xlu0 %799
    %801 = vrot.lane.b32.xlu0 %v736, 65
    %v802 = vpop.permute.xlu0 %801
    %803 = vrot.lane.b32.xlu0 %v739, 65
    %v804 = vpop.permute.xlu0 %803
    %805 = vrot.lane.b32.xlu0 %v742, 65
    %v806 = vpop.permute.xlu0 %805
    %807 = vrot.lane.b32.xlu0 %v744, 65
    %v808 = vpop.permute.xlu0 %807
    %809 = vrot.lane.b32.xlu0 %v746, 65
    %v810 = vpop.permute.xlu0 %809
    %811 = vrot.lane.b32.xlu0 %v748, 65
    %v812 = vpop.permute.xlu0 %811
    %813 = vrot.lane.b32.xlu0 %v750, 65
    %v814 = vpop.permute.xlu0 %813
    %815 = vrot.lane.b32.xlu0 %v752, 65
    %v816 = vpop.permute.xlu0 %815
    %817 = vrot.lane.b32.xlu0 %v754, 65
    %v818 = vpop.permute.xlu0 %817
    %819 = vrot.lane.b32.xlu0 %v756, 65
    %v820 = vpop.permute.xlu0 %819
    %821 = vrot.lane.b32.xlu0 %v758, 65
    %v822 = vpop.permute.xlu0 %821
    %823 = vrot.lane.b32.xlu0 %v760, 65
    %v824 = vpop.permute.xlu0 %823
    %825 = vrot.lane.b32.xlu0 %v762, 65
    %v826 = vpop.permute.xlu0 %825
    %827 = vrot.lane.b32.xlu0 %v764, 65
    %v828 = vpop.permute.xlu0 %827
    %829 = vrot.lane.b32.xlu0 %v766, 65
    %v830 = vpop.permute.xlu0 %829
    %831 = vrot.lane.b32.xlu0 %v768, 65
    %v832 = vpop.permute.xlu0 %831
    %833 = vrot.lane.b32.xlu0 %v770, 65
    %v834 = vpop.permute.xlu0 %833
    %v835 = vsel %vm368, %v772, %v774
    %v836 = vsel %vm368, %v776, %v778
    %v837 = vsel %vm368, %v780, %v782
    %v838 = vsel %vm368, %v784, %v786
    %v839 = vsel %vm368, %v788, %v790
    %v840 = vsel %vm368, %v792, %v794
    %v841 = vsel %vm368, %v796, %v798
    %v842 = vsel %vm368, %v800, %v802
    %v843 = vsel %vm368, %v804, %v806
    %v844 = vsel %vm368, %v808, %v810
    %v845 = vsel %vm368, %v812, %v814
    %v846 = vsel %vm368, %v816, %v818
    %v847 = vsel %vm368, %v820, %v822
    %v848 = vsel %vm368, %v824, %v826
    %v849 = vsel %vm368, %v828, %v830
    %v850 = vsel %vm368, %v832, %v834
    %v867 = vmul.f32 %v693, %v835
    %v868 = vmul.f32 %v693, %v836
    %v869 = vmul.f32 %v693, %v837
    %v870 = vmul.f32 %v693, %v838
    %v871 = vmul.f32 %v693, %v839
    %v872 = vmul.f32 %v693, %v840
    %v873 = vmul.f32 %v693, %v841
    %v874 = vmul.f32 %v693, %v842
    %v875 = vmul.f32 %v693, %v843
    %v876 = vmul.f32 %v693, %v844
    %v877 = vmul.f32 %v693, %v845
    %v878 = vmul.f32 %v693, %v846
    %v879 = vmul.f32 %v693, %v847
    %v880 = vmul.f32 %v693, %v848
    %v881 = vmul.f32 %v693, %v849
    %v882 = vmul.f32 %v693, %v850
    %v883 = vadd.f32 %v666, %v867
    %v884 = vadd.f32 %v667, %v868
    %v885 = vadd.f32 %v668, %v869
    %v886 = vadd.f32 %v669, %v870
    %v887 = vadd.f32 %v670, %v871
    %v888 = vadd.f32 %v671, %v872
    %v889 = vadd.f32 %v672, %v873
    %v890 = vadd.f32 %v673, %v874
    %v891 = vadd.f32 %v674, %v875
    %v892 = vadd.f32 %v675, %v876
    %v893 = vadd.f32 %v676, %v877
    %v894 = vadd.f32 %v677, %v878
    %v895 = vadd.f32 %v678, %v879
    %v896 = vadd.f32 %v679, %v880
    %v897 = vadd.f32 %v680, %v881
    %v898 = vadd.f32 %v681, %v882
    %v899 = vlaneseq
    %v900 = vshrl.u32 %v899, 7
    %v901 = vsub.s32 4, %v900
    %v902 = vrot.slane %v234, %v901
    %903 = vrot.lane.b32.xlu0 %v705, 64
    %v904 = vpop.permute.xlu0 %903
    %905 = vrot.lane.b32.xlu0 %v708, 64
    %v906 = vpop.permute.xlu0 %905
    %907 = vrot.lane.b32.xlu0 %v710, 64
    %v908 = vpop.permute.xlu0 %907
    %909 = vrot.lane.b32.xlu0 %v712, 64
    %v910 = vpop.permute.xlu0 %909
    %911 = vrot.lane.b32.xlu0 %v714, 64
    %v912 = vpop.permute.xlu0 %911
    %913 = vrot.lane.b32.xlu0 %v716, 64
    %v914 = vpop.permute.xlu0 %913
    %915 = vrot.lane.b32.xlu0 %v718, 64
    %v916 = vpop.permute.xlu0 %915
    %917 = vrot.lane.b32.xlu0 %v720, 64
    %v918 = vpop.permute.xlu0 %917
    %919 = vrot.lane.b32.xlu0 %v722, 64
    %v920 = vpop.permute.xlu0 %919
    %921 = vrot.lane.b32.xlu0 %v724, 64
    %v922 = vpop.permute.xlu0 %921
    %923 = vrot.lane.b32.xlu0 %v726, 64
    %v924 = vpop.permute.xlu0 %923
    %925 = vrot.lane.b32.xlu0 %v728, 64
    %v926 = vpop.permute.xlu0 %925
    %927 = vrot.lane.b32.xlu0 %v730, 64
    %v928 = vpop.permute.xlu0 %927
    %929 = vrot.lane.b32.xlu0 %v732, 64
    %v930 = vpop.permute.xlu0 %929
    %931 = vrot.lane.b32.xlu0 %v734, 64
    %v932 = vpop.permute.xlu0 %931
    %933 = vrot.lane.b32.xlu0 %v736, 64
    %v934 = vpop.permute.xlu0 %933
    %935 = vrot.lane.b32.xlu0 %v739, 64
    %v936 = vpop.permute.xlu0 %935
    %937 = vrot.lane.b32.xlu0 %v742, 64
    %v938 = vpop.permute.xlu0 %937
    %939 = vrot.lane.b32.xlu0 %v744, 64
    %v940 = vpop.permute.xlu0 %939
    %941 = vrot.lane.b32.xlu0 %v746, 64
    %v942 = vpop.permute.xlu0 %941
    %943 = vrot.lane.b32.xlu0 %v748, 64
    %v944 = vpop.permute.xlu0 %943
    %945 = vrot.lane.b32.xlu0 %v750, 64
    %v946 = vpop.permute.xlu0 %945
    %947 = vrot.lane.b32.xlu0 %v752, 64
    %v948 = vpop.permute.xlu0 %947
    %949 = vrot.lane.b32.xlu0 %v754, 64
    %v950 = vpop.permute.xlu0 %949
    %951 = vrot.lane.b32.xlu0 %v756, 64
    %v952 = vpop.permute.xlu0 %951
    %953 = vrot.lane.b32.xlu0 %v758, 64
    %v954 = vpop.permute.xlu0 %953
    %955 = vrot.lane.b32.xlu0 %v760, 64
    %v956 = vpop.permute.xlu0 %955
    %957 = vrot.lane.b32.xlu0 %v762, 64
    %v958 = vpop.permute.xlu0 %957
    %959 = vrot.lane.b32.xlu0 %v764, 64
    %v960 = vpop.permute.xlu0 %959
    %961 = vrot.lane.b32.xlu0 %v766, 64
    %v962 = vpop.permute.xlu0 %961
    %963 = vrot.lane.b32.xlu0 %v768, 64
    %v964 = vpop.permute.xlu0 %963
    %965 = vrot.lane.b32.xlu0 %v770, 64
    %v966 = vpop.permute.xlu0 %965
    %v967 = vsel %vm215, %v904, %v906
    %v968 = vsel %vm215, %v908, %v910
    %v969 = vsel %vm215, %v912, %v914
    %v970 = vsel %vm215, %v916, %v918
    %v971 = vsel %vm215, %v920, %v922
    %v972 = vsel %vm215, %v924, %v926
    %v973 = vsel %vm215, %v928, %v930
    %v974 = vsel %vm215, %v932, %v934
    %v975 = vsel %vm215, %v936, %v938
    %v976 = vsel %vm215, %v940, %v942
    %v977 = vsel %vm215, %v944, %v946
    %v978 = vsel %vm215, %v948, %v950
    %v979 = vsel %vm215, %v952, %v954
    %v980 = vsel %vm215, %v956, %v958
    %v981 = vsel %vm215, %v960, %v962
    %v982 = vsel %vm215, %v964, %v966
    %v999 = vmul.f32 %v902, %v967
    %v1000 = vmul.f32 %v902, %v968
    %v1001 = vmul.f32 %v902, %v969
    %v1002 = vmul.f32 %v902, %v970
    %v1003 = vmul.f32 %v902, %v971
    %v1004 = vmul.f32 %v902, %v972
    %v1005 = vmul.f32 %v902, %v973
    %v1006 = vmul.f32 %v902, %v974
    %v1007 = vmul.f32 %v902, %v975
    %v1008 = vmul.f32 %v902, %v976
    %v1009 = vmul.f32 %v902, %v977
    %v1010 = vmul.f32 %v902, %v978
    %v1011 = vmul.f32 %v902, %v979
    %v1012 = vmul.f32 %v902, %v980
    %v1013 = vmul.f32 %v902, %v981
    %v1014 = vmul.f32 %v902, %v982
    %v1015 = vadd.f32 %v883, %v999
    %v1016 = vadd.f32 %v884, %v1000
    %v1017 = vadd.f32 %v885, %v1001
    %v1018 = vadd.f32 %v886, %v1002
    %v1019 = vadd.f32 %v887, %v1003
    %v1020 = vadd.f32 %v888, %v1004
    %v1021 = vadd.f32 %v889, %v1005
    %v1022 = vadd.f32 %v890, %v1006
    %v1023 = vadd.f32 %v891, %v1007
    %v1024 = vadd.f32 %v892, %v1008
    %v1025 = vadd.f32 %v893, %v1009
    %v1026 = vadd.f32 %v894, %v1010
    %v1027 = vadd.f32 %v895, %v1011
    %v1028 = vadd.f32 %v896, %v1012
    %v1029 = vadd.f32 %v897, %v1013
    %v1030 = vadd.f32 %v898, %v1014
    %v1031 = vlaneseq
    %v1032 = vshrl.u32 %v1031, 7
    %v1033 = vsub.s32 5, %v1032
    %v1034 = vrot.slane %v234, %v1033
    %1035 = vrot.lane.b32.xlu0 %v705, 63
    %v1036 = vpop.permute.xlu0 %1035
    %1037 = vrot.lane.b32.xlu0 %v708, 63
    %v1038 = vpop.permute.xlu0 %1037
    %1039 = vrot.lane.b32.xlu0 %v710, 63
    %v1040 = vpop.permute.xlu0 %1039
    %1041 = vrot.lane.b32.xlu0 %v712, 63
    %v1042 = vpop.permute.xlu0 %1041
    %1043 = vrot.lane.b32.xlu0 %v714, 63
    %v1044 = vpop.permute.xlu0 %1043
    %1045 = vrot.lane.b32.xlu0 %v716, 63
    %v1046 = vpop.permute.xlu0 %1045
    %1047 = vrot.lane.b32.xlu0 %v718, 63
    %v1048 = vpop.permute.xlu0 %1047
    %1049 = vrot.lane.b32.xlu0 %v720, 63
    %v1050 = vpop.permute.xlu0 %1049
    %1051 = vrot.lane.b32.xlu0 %v722, 63
    %v1052 = vpop.permute.xlu0 %1051
    %1053 = vrot.lane.b32.xlu0 %v724, 63
    %v1054 = vpop.permute.xlu0 %1053
    %1055 = vrot.lane.b32.xlu0 %v726, 63
    %v1056 = vpop.permute.xlu0 %1055
    %1057 = vrot.lane.b32.xlu0 %v728, 63
    %v1058 = vpop.permute.xlu0 %1057
    %1059 = vrot.lane.b32.xlu0 %v730, 63
    %v1060 = vpop.permute.xlu0 %1059
    %1061 = vrot.lane.b32.xlu0 %v732, 63
    %v1062 = vpop.permute.xlu0 %1061
    %1063 = vrot.lane.b32.xlu0 %v734, 63
    %v1064 = vpop.permute.xlu0 %1063
    %1065 = vrot.lane.b32.xlu0 %v736, 63
    %v1066 = vpop.permute.xlu0 %1065
    %1067 = vrot.lane.b32.xlu0 %v739, 63
    %v1068 = vpop.permute.xlu0 %1067
    %1069 = vrot.lane.b32.xlu0 %v742, 63
    %v1070 = vpop.permute.xlu0 %1069
    %1071 = vrot.lane.b32.xlu0 %v744, 63
    %v1072 = vpop.permute.xlu0 %1071
    %1073 = vrot.lane.b32.xlu0 %v746, 63
    %v1074 = vpop.permute.xlu0 %1073
    %1075 = vrot.lane.b32.xlu0 %v748, 63
    %v1076 = vpop.permute.xlu0 %1075
    %1077 = vrot.lane.b32.xlu0 %v750, 63
    %v1078 = vpop.permute.xlu0 %1077
    %1079 = vrot.lane.b32.xlu0 %v752, 63
    %v1080 = vpop.permute.xlu0 %1079
    %1081 = vrot.lane.b32.xlu0 %v754, 63
    %v1082 = vpop.permute.xlu0 %1081
    %1083 = vrot.lane.b32.xlu0 %v756, 63
    %v1084 = vpop.permute.xlu0 %1083
    %1085 = vrot.lane.b32.xlu0 %v758, 63
    %v1086 = vpop.permute.xlu0 %1085
    %1087 = vrot.lane.b32.xlu0 %v760, 63
    %v1088 = vpop.permute.xlu0 %1087
    %1089 = vrot.lane.b32.xlu0 %v762, 63
    %v1090 = vpop.permute.xlu0 %1089
    %1091 = vrot.lane.b32.xlu0 %v764, 63
    %v1092 = vpop.permute.xlu0 %1091
    %1093 = vrot.lane.b32.xlu0 %v766, 63
    %v1094 = vpop.permute.xlu0 %1093
    %1095 = vrot.lane.b32.xlu0 %v768, 63
    %v1096 = vpop.permute.xlu0 %1095
    %1097 = vrot.lane.b32.xlu0 %v770, 63
    %v1098 = vpop.permute.xlu0 %1097
    %v1099 = vsel %vm617, %v1036, %v1038
    %v1100 = vsel %vm617, %v1040, %v1042
    %v1101 = vsel %vm617, %v1044, %v1046
    %v1102 = vsel %vm617, %v1048, %v1050
    %v1103 = vsel %vm617, %v1052, %v1054
    %v1104 = vsel %vm617, %v1056, %v1058
    %v1105 = vsel %vm617, %v1060, %v1062
    %v1106 = vsel %vm617, %v1064, %v1066
    %v1107 = vsel %vm617, %v1068, %v1070
    %v1108 = vsel %vm617, %v1072, %v1074
    %v1109 = vsel %vm617, %v1076, %v1078
    %v1110 = vsel %vm617, %v1080, %v1082
    %v1111 = vsel %vm617, %v1084, %v1086
    %v1112 = vsel %vm617, %v1088, %v1090
    %v1113 = vsel %vm617, %v1092, %v1094
    %v1114 = vsel %vm617, %v1096, %v1098
    %v1131 = vmul.f32 %v1034, %v1099
    %v1132 = vmul.f32 %v1034, %v1100
    %v1133 = vmul.f32 %v1034, %v1101
    %v1134 = vmul.f32 %v1034, %v1102
    %v1135 = vmul.f32 %v1034, %v1103
    %v1136 = vmul.f32 %v1034, %v1104
    %v1137 = vmul.f32 %v1034, %v1105
    %v1138 = vmul.f32 %v1034, %v1106
    %v1139 = vmul.f32 %v1034, %v1107
    %v1140 = vmul.f32 %v1034, %v1108
    %v1141 = vmul.f32 %v1034, %v1109
    %v1142 = vmul.f32 %v1034, %v1110
    %v1143 = vmul.f32 %v1034, %v1111
    %v1144 = vmul.f32 %v1034, %v1112
    %v1145 = vmul.f32 %v1034, %v1113
    %v1146 = vmul.f32 %v1034, %v1114
    %v1147 = vadd.f32 %v1015, %v1131
    %v1148 = vadd.f32 %v1016, %v1132
    %v1149 = vadd.f32 %v1017, %v1133
    %v1150 = vadd.f32 %v1018, %v1134
    %v1151 = vadd.f32 %v1019, %v1135
    %v1152 = vadd.f32 %v1020, %v1136
    %v1153 = vadd.f32 %v1021, %v1137
    %v1154 = vadd.f32 %v1022, %v1138
    %v1155 = vadd.f32 %v1023, %v1139
    %v1156 = vadd.f32 %v1024, %v1140
    %v1157 = vadd.f32 %v1025, %v1141
    %v1158 = vadd.f32 %v1026, %v1142
    %v1159 = vadd.f32 %v1027, %v1143
    %v1160 = vadd.f32 %v1028, %v1144
    %v1161 = vadd.f32 %v1029, %v1145
    %v1162 = vadd.f32 %v1030, %v1146
    %v1163 = vld [vmem:[#allocation2] sm:$0xfc]
    %v1164 = vld [vmem:[#allocation2 + $0x8] sm:$0xfc]
    %v1165 = vld [vmem:[#allocation2 + $0x80] sm:$0x3]
    %v1166 = vld [vmem:[#allocation2 + $0x88] sm:$0x3]
    %v1167 = vld [vmem:[#allocation2 + $0x90] sm:$0xfc]
    %v1168 = vld [vmem:[#allocation2 + $0x98] sm:$0xfc]
    %v1169 = vld [vmem:[#allocation2 + $0x110] sm:$0x3]
    %v1170 = vld [vmem:[#allocation2 + $0x118] sm:$0x3]
    %v1171 = vlaneseq
    %v1172 = vshrl.u32 %v1171, 7
    %v1173 = vsub.s32 6, %v1172
    %v1174 = vrot.slane %v234, %v1173
    %vm1183 = vcmask 1045504
    %v1184 = vrot.slane %v1163, 2
    %v1185 = vrot.slane %v238, 2
    %v1186 = vsel %vm1183, %v1184, %v1185
    %v1187 = vrot.slane %v1164, 2
    %v1188 = vrot.slane %v239, 2
    %v1189 = vsel %vm1183, %v1187, %v1188
    %v1190 = vrot.slane %v240, 2
    %v1191 = vsel %vm1183, %v1185, %v1190
    %v1192 = vrot.slane %v241, 2
    %v1193 = vsel %vm1183, %v1188, %v1192
    %v1194 = vrot.slane %v242, 2
    %v1195 = vsel %vm1183, %v1190, %v1194
    %v1196 = vrot.slane %v243, 2
    %v1197 = vsel %vm1183, %v1192, %v1196
    %v1198 = vrot.slane %v244, 2
    %v1199 = vsel %vm1183, %v1194, %v1198
    %v1200 = vrot.slane %v245, 2
    %v1201 = vsel %vm1183, %v1196, %v1200
    %v1202 = vrot.slane %v246, 2
    %v1203 = vsel %vm1183, %v1198, %v1202
    %v1204 = vrot.slane %v247, 2
    %v1205 = vsel %vm1183, %v1200, %v1204
    %v1206 = vrot.slane %v248, 2
    %v1207 = vsel %vm1183, %v1202, %v1206
    %v1208 = vrot.slane %v249, 2
    %v1209 = vsel %vm1183, %v1204, %v1208
    %v1210 = vrot.slane %v250, 2
    %v1211 = vsel %vm1183, %v1206, %v1210
    %v1212 = vrot.slane %v251, 2
    %v1213 = vsel %vm1183, %v1208, %v1212
    %v1214 = vrot.slane %v1165, 2
    %v1215 = vsel %vm1183, %v1210, %v1214
    %v1216 = vrot.slane %v1166, 2
    %v1217 = vsel %vm1183, %v1212, %v1216
    %v1218 = vrot.slane %v1167, 2
    %v1219 = vrot.slane %v254, 2
    %v1220 = vsel %vm1183, %v1218, %v1219
    %v1221 = vrot.slane %v1168, 2
    %v1222 = vrot.slane %v255, 2
    %v1223 = vsel %vm1183, %v1221, %v1222
    %v1224 = vrot.slane %v256, 2
    %v1225 = vsel %vm1183, %v1219, %v1224
    %v1226 = vrot.slane %v257, 2
    %v1227 = vsel %vm1183, %v1222, %v1226
    %v1228 = vrot.slane %v258, 2
    %v1229 = vsel %vm1183, %v1224, %v1228
    %v1230 = vrot.slane %v259, 2
    %v1231 = vsel %vm1183, %v1226, %v1230
    %v1232 = vrot.slane %v260, 2
    %v1233 = vsel %vm1183, %v1228, %v1232
    %v1234 = vrot.slane %v261, 2
    %v1235 = vsel %vm1183, %v1230, %v1234
    %v1236 = vrot.slane %v262, 2
    %v1237 = vsel %vm1183, %v1232, %v1236
    %v1238 = vrot.slane %v263, 2
    %v1239 = vsel %vm1183, %v1234, %v1238
    %v1240 = vrot.slane %v264, 2
    %v1241 = vsel %vm1183, %v1236, %v1240
    %v1242 = vrot.slane %v265, 2
    %v1243 = vsel %vm1183, %v1238, %v1242
    %v1244 = vrot.slane %v266, 2
    %v1245 = vsel %vm1183, %v1240, %v1244
    %v1246 = vrot.slane %v267, 2
    %v1247 = vsel %vm1183, %v1242, %v1246
    %v1248 = vrot.slane %v1169, 2
    %v1249 = vsel %vm1183, %v1244, %v1248
    %v1250 = vrot.slane %v1170, 2
    %v1251 = vsel %vm1183, %v1246, %v1250
    %1252 = vrot.lane.b32.xlu0 %v1186, 65
    %v1253 = vpop.permute.xlu0 %1252
    %1254 = vrot.lane.b32.xlu0 %v1189, 65
    %v1255 = vpop.permute.xlu0 %1254
    %1256 = vrot.lane.b32.xlu0 %v1191, 65
    %v1257 = vpop.permute.xlu0 %1256
    %1258 = vrot.lane.b32.xlu0 %v1193, 65
    %v1259 = vpop.permute.xlu0 %1258
    %1260 = vrot.lane.b32.xlu0 %v1195, 65
    %v1261 = vpop.permute.xlu0 %1260
    %1262 = vrot.lane.b32.xlu0 %v1197, 65
    %v1263 = vpop.permute.xlu0 %1262
    %1264 = vrot.lane.b32.xlu0 %v1199, 65
    %v1265 = vpop.permute.xlu0 %1264
    %1266 = vrot.lane.b32.xlu0 %v1201, 65
    %v1267 = vpop.permute.xlu0 %1266
    %1268 = vrot.lane.b32.xlu0 %v1203, 65
    %v1269 = vpop.permute.xlu0 %1268
    %1270 = vrot.lane.b32.xlu0 %v1205, 65
    %v1271 = vpop.permute.xlu0 %1270
    %1272 = vrot.lane.b32.xlu0 %v1207, 65
    %v1273 = vpop.permute.xlu0 %1272
    %1274 = vrot.lane.b32.xlu0 %v1209, 65
    %v1275 = vpop.permute.xlu0 %1274
    %1276 = vrot.lane.b32.xlu0 %v1211, 65
    %v1277 = vpop.permute.xlu0 %1276
    %1278 = vrot.lane.b32.xlu0 %v1213, 65
    %v1279 = vpop.permute.xlu0 %1278
    %1280 = vrot.lane.b32.xlu0 %v1215, 65
    %v1281 = vpop.permute.xlu0 %1280
    %1282 = vrot.lane.b32.xlu0 %v1217, 65
    %v1283 = vpop.permute.xlu0 %1282
    %1284 = vrot.lane.b32.xlu0 %v1220, 65
    %v1285 = vpop.permute.xlu0 %1284
    %1286 = vrot.lane.b32.xlu0 %v1223, 65
    %v1287 = vpop.permute.xlu0 %1286
    %1288 = vrot.lane.b32.xlu0 %v1225, 65
    %v1289 = vpop.permute.xlu0 %1288
    %1290 = vrot.lane.b32.xlu0 %v1227, 65
    %v1291 = vpop.permute.xlu0 %1290
    %1292 = vrot.lane.b32.xlu0 %v1229, 65
    %v1293 = vpop.permute.xlu0 %1292
    %1294 = vrot.lane.b32.xlu0 %v1231, 65
    %v1295 = vpop.permute.xlu0 %1294
    %1296 = vrot.lane.b32.xlu0 %v1233, 65
    %v1297 = vpop.permute.xlu0 %1296
    %1298 = vrot.lane.b32.xlu0 %v1235, 65
    %v1299 = vpop.permute.xlu0 %1298
    %1300 = vrot.lane.b32.xlu0 %v1237, 65
    %v1301 = vpop.permute.xlu0 %1300
    %1302 = vrot.lane.b32.xlu0 %v1239, 65
    %v1303 = vpop.permute.xlu0 %1302
    %1304 = vrot.lane.b32.xlu0 %v1241, 65
    %v1305 = vpop.permute.xlu0 %1304
    %1306 = vrot.lane.b32.xlu0 %v1243, 65
    %v1307 = vpop.permute.xlu0 %1306
    %1308 = vrot.lane.b32.xlu0 %v1245, 65
    %v1309 = vpop.permute.xlu0 %1308
    %1310 = vrot.lane.b32.xlu0 %v1247, 65
    %v1311 = vpop.permute.xlu0 %1310
    %1312 = vrot.lane.b32.xlu0 %v1249, 65
    %v1313 = vpop.permute.xlu0 %1312
    %1314 = vrot.lane.b32.xlu0 %v1251, 65
    %v1315 = vpop.permute.xlu0 %1314
    %v1316 = vsel %vm368, %v1253, %v1255
    %v1317 = vsel %vm368, %v1257, %v1259
    %v1318 = vsel %vm368, %v1261, %v1263
    %v1319 = vsel %vm368, %v1265, %v1267
    %v1320 = vsel %vm368, %v1269, %v1271
    %v1321 = vsel %vm368, %v1273, %v1275
    %v1322 = vsel %vm368, %v1277, %v1279
    %v1323 = vsel %vm368, %v1281, %v1283
    %v1324 = vsel %vm368, %v1285, %v1287
    %v1325 = vsel %vm368, %v1289, %v1291
    %v1326 = vsel %vm368, %v1293, %v1295
    %v1327 = vsel %vm368, %v1297, %v1299
    %v1328 = vsel %vm368, %v1301, %v1303
    %v1329 = vsel %vm368, %v1305, %v1307
    %v1330 = vsel %vm368, %v1309, %v1311
    %v1331 = vsel %vm368, %v1313, %v1315
    %v1348 = vmul.f32 %v1174, %v1316
    %v1349 = vmul.f32 %v1174, %v1317
    %v1350 = vmul.f32 %v1174, %v1318
    %v1351 = vmul.f32 %v1174, %v1319
    %v1352 = vmul.f32 %v1174, %v1320
    %v1353 = vmul.f32 %v1174, %v1321
    %v1354 = vmul.f32 %v1174, %v1322
    %v1355 = vmul.f32 %v1174, %v1323
    %v1356 = vmul.f32 %v1174, %v1324
    %v1357 = vmul.f32 %v1174, %v1325
    %v1358 = vmul.f32 %v1174, %v1326
    %v1359 = vmul.f32 %v1174, %v1327
    %v1360 = vmul.f32 %v1174, %v1328
    %v1361 = vmul.f32 %v1174, %v1329
    %v1362 = vmul.f32 %v1174, %v1330
    %v1363 = vmul.f32 %v1174, %v1331
    %v1364 = vadd.f32 %v1147, %v1348
    %v1365 = vadd.f32 %v1148, %v1349
    %v1366 = vadd.f32 %v1149, %v1350
    %v1367 = vadd.f32 %v1150, %v1351
    %v1368 = vadd.f32 %v1151, %v1352
    %v1369 = vadd.f32 %v1152, %v1353
    %v1370 = vadd.f32 %v1153, %v1354
    %v1371 = vadd.f32 %v1154, %v1355
    %v1372 = vadd.f32 %v1155, %v1356
    %v1373 = vadd.f32 %v1156, %v1357
    %v1374 = vadd.f32 %v1157, %v1358
    %v1375 = vadd.f32 %v1158, %v1359
    %v1376 = vadd.f32 %v1159, %v1360
    %v1377 = vadd.f32 %v1160, %v1361
    %v1378 = vadd.f32 %v1161, %v1362
    %v1379 = vadd.f32 %v1162, %v1363
    %v1380 = vlaneseq
    %v1381 = vshrl.u32 %v1380, 7
    %v1382 = vsub.s32 7, %v1381
    %v1383 = vrot.slane %v234, %v1382
    %1384 = vrot.lane.b32.xlu0 %v1186, 64
    %v1385 = vpop.permute.xlu0 %1384
    %1386 = vrot.lane.b32.xlu0 %v1189, 64
    %v1387 = vpop.permute.xlu0 %1386
    %1388 = vrot.lane.b32.xlu0 %v1191, 64
    %v1389 = vpop.permute.xlu0 %1388
    %1390 = vrot.lane.b32.xlu0 %v1193, 64
    %v1391 = vpop.permute.xlu0 %1390
    %1392 = vrot.lane.b32.xlu0 %v1195, 64
    %v1393 = vpop.permute.xlu0 %1392
    %1394 = vrot.lane.b32.xlu0 %v1197, 64
    %v1395 = vpop.permute.xlu0 %1394
    %1396 = vrot.lane.b32.xlu0 %v1199, 64
    %v1397 = vpop.permute.xlu0 %1396
    %1398 = vrot.lane.b32.xlu0 %v1201, 64
    %v1399 = vpop.permute.xlu0 %1398
    %1400 = vrot.lane.b32.xlu0 %v1203, 64
    %v1401 = vpop.permute.xlu0 %1400
    %1402 = vrot.lane.b32.xlu0 %v1205, 64
    %v1403 = vpop.permute.xlu0 %1402
    %1404 = vrot.lane.b32.xlu0 %v1207, 64
    %v1405 = vpop.permute.xlu0 %1404
    %1406 = vrot.lane.b32.xlu0 %v1209, 64
    %v1407 = vpop.permute.xlu0 %1406
    %1408 = vrot.lane.b32.xlu0 %v1211, 64
    %v1409 = vpop.permute.xlu0 %1408
    %1410 = vrot.lane.b32.xlu0 %v1213, 64
    %v1411 = vpop.permute.xlu0 %1410
    %1412 = vrot.lane.b32.xlu0 %v1215, 64
    %v1413 = vpop.permute.xlu0 %1412
    %1414 = vrot.lane.b32.xlu0 %v1217, 64
    %v1415 = vpop.permute.xlu0 %1414
    %1416 = vrot.lane.b32.xlu0 %v1220, 64
    %v1417 = vpop.permute.xlu0 %1416
    %1418 = vrot.lane.b32.xlu0 %v1223, 64
    %v1419 = vpop.permute.xlu0 %1418
    %1420 = vrot.lane.b32.xlu0 %v1225, 64
    %v1421 = vpop.permute.xlu0 %1420
    %1422 = vrot.lane.b32.xlu0 %v1227, 64
    %v1423 = vpop.permute.xlu0 %1422
    %1424 = vrot.lane.b32.xlu0 %v1229, 64
    %v1425 = vpop.permute.xlu0 %1424
    %1426 = vrot.lane.b32.xlu0 %v1231, 64
    %v1427 = vpop.permute.xlu0 %1426
    %1428 = vrot.lane.b32.xlu0 %v1233, 64
    %v1429 = vpop.permute.xlu0 %1428
    %1430 = vrot.lane.b32.xlu0 %v1235, 64
    %v1431 = vpop.permute.xlu0 %1430
    %1432 = vrot.lane.b32.xlu0 %v1237, 64
    %v1433 = vpop.permute.xlu0 %1432
    %1434 = vrot.lane.b32.xlu0 %v1239, 64
    %v1435 = vpop.permute.xlu0 %1434
    %1436 = vrot.lane.b32.xlu0 %v1241, 64
    %v1437 = vpop.permute.xlu0 %1436
    %1438 = vrot.lane.b32.xlu0 %v1243, 64
    %v1439 = vpop.permute.xlu0 %1438
    %1440 = vrot.lane.b32.xlu0 %v1245, 64
    %v1441 = vpop.permute.xlu0 %1440
    %1442 = vrot.lane.b32.xlu0 %v1247, 64
    %v1443 = vpop.permute.xlu0 %1442
    %1444 = vrot.lane.b32.xlu0 %v1249, 64
    %v1445 = vpop.permute.xlu0 %1444
    %1446 = vrot.lane.b32.xlu0 %v1251, 64
    %v1447 = vpop.permute.xlu0 %1446
    %v1448 = vsel %vm215, %v1385, %v1387
    %v1449 = vsel %vm215, %v1389, %v1391
    %v1450 = vsel %vm215, %v1393, %v1395
    %v1451 = vsel %vm215, %v1397, %v1399
    %v1452 = vsel %vm215, %v1401, %v1403
    %v1453 = vsel %vm215, %v1405, %v1407
    %v1454 = vsel %vm215, %v1409, %v1411
    %v1455 = vsel %vm215, %v1413, %v1415
    %v1456 = vsel %vm215, %v1417, %v1419
    %v1457 = vsel %vm215, %v1421, %v1423
    %v1458 = vsel %vm215, %v1425, %v1427
    %v1459 = vsel %vm215, %v1429, %v1431
    %v1460 = vsel %vm215, %v1433, %v1435
    %v1461 = vsel %vm215, %v1437, %v1439
    %v1462 = vsel %vm215, %v1441, %v1443
    %v1463 = vsel %vm215, %v1445, %v1447
    %v1480 = vmul.f32 %v1383, %v1448
    %v1481 = vmul.f32 %v1383, %v1449
    %v1482 = vmul.f32 %v1383, %v1450
    %v1483 = vmul.f32 %v1383, %v1451
    %v1484 = vmul.f32 %v1383, %v1452
    %v1485 = vmul.f32 %v1383, %v1453
    %v1486 = vmul.f32 %v1383, %v1454
    %v1487 = vmul.f32 %v1383, %v1455
    %v1488 = vmul.f32 %v1383, %v1456
    %v1489 = vmul.f32 %v1383, %v1457
    %v1490 = vmul.f32 %v1383, %v1458
    %v1491 = vmul.f32 %v1383, %v1459
    %v1492 = vmul.f32 %v1383, %v1460
    %v1493 = vmul.f32 %v1383, %v1461
    %v1494 = vmul.f32 %v1383, %v1462
    %v1495 = vmul.f32 %v1383, %v1463
    %v1496 = vadd.f32 %v1364, %v1480
    %v1497 = vadd.f32 %v1365, %v1481
    %v1498 = vadd.f32 %v1366, %v1482
    %v1499 = vadd.f32 %v1367, %v1483
    %v1500 = vadd.f32 %v1368, %v1484
    %v1501 = vadd.f32 %v1369, %v1485
    %v1502 = vadd.f32 %v1370, %v1486
    %v1503 = vadd.f32 %v1371, %v1487
    %v1504 = vadd.f32 %v1372, %v1488
    %v1505 = vadd.f32 %v1373, %v1489
    %v1506 = vadd.f32 %v1374, %v1490
    %v1507 = vadd.f32 %v1375, %v1491
    %v1508 = vadd.f32 %v1376, %v1492
    %v1509 = vadd.f32 %v1377, %v1493
    %v1510 = vadd.f32 %v1378, %v1494
    %v1511 = vadd.f32 %v1379, %v1495
    %v1512 = vlaneseq
    %v1513 = vshrl.u32 %v1512, 7
    %v1514 = vsub.s32 0, %v1513
    %v1515 = vrot.slane %v235, %v1514
    %1516 = vrot.lane.b32.xlu0 %v1186, 63
    %v1517 = vpop.permute.xlu0 %1516
    %1518 = vrot.lane.b32.xlu0 %v1189, 63
    %v1519 = vpop.permute.xlu0 %1518
    %1520 = vrot.lane.b32.xlu0 %v1191, 63
    %v1521 = vpop.permute.xlu0 %1520
    %1522 = vrot.lane.b32.xlu0 %v1193, 63
    %v1523 = vpop.permute.xlu0 %1522
    %1524 = vrot.lane.b32.xlu0 %v1195, 63
    %v1525 = vpop.permute.xlu0 %1524
    %1526 = vrot.lane.b32.xlu0 %v1197, 63
    %v1527 = vpop.permute.xlu0 %1526
    %1528 = vrot.lane.b32.xlu0 %v1199, 63
    %v1529 = vpop.permute.xlu0 %1528
    %1530 = vrot.lane.b32.xlu0 %v1201, 63
    %v1531 = vpop.permute.xlu0 %1530
    %1532 = vrot.lane.b32.xlu0 %v1203, 63
    %v1533 = vpop.permute.xlu0 %1532
    %1534 = vrot.lane.b32.xlu0 %v1205, 63
    %v1535 = vpop.permute.xlu0 %1534
    %1536 = vrot.lane.b32.xlu0 %v1207, 63
    %v1537 = vpop.permute.xlu0 %1536
    %1538 = vrot.lane.b32.xlu0 %v1209, 63
    %v1539 = vpop.permute.xlu0 %1538
    %1540 = vrot.lane.b32.xlu0 %v1211, 63
    %v1541 = vpop.permute.xlu0 %1540
    %1542 = vrot.lane.b32.xlu0 %v1213, 63
    %v1543 = vpop.permute.xlu0 %1542
    %1544 = vrot.lane.b32.xlu0 %v1215, 63
    %v1545 = vpop.permute.xlu0 %1544
    %1546 = vrot.lane.b32.xlu0 %v1217, 63
    %v1547 = vpop.permute.xlu0 %1546
    %1548 = vrot.lane.b32.xlu0 %v1220, 63
    %v1549 = vpop.permute.xlu0 %1548
    %1550 = vrot.lane.b32.xlu0 %v1223, 63
    %v1551 = vpop.permute.xlu0 %1550
    %1552 = vrot.lane.b32.xlu0 %v1225, 63
    %v1553 = vpop.permute.xlu0 %1552
    %1554 = vrot.lane.b32.xlu0 %v1227, 63
    %v1555 = vpop.permute.xlu0 %1554
    %1556 = vrot.lane.b32.xlu0 %v1229, 63
    %v1557 = vpop.permute.xlu0 %1556
    %1558 = vrot.lane.b32.xlu0 %v1231, 63
    %v1559 = vpop.permute.xlu0 %1558
    %1560 = vrot.lane.b32.xlu0 %v1233, 63
    %v1561 = vpop.permute.xlu0 %1560
    %1562 = vrot.lane.b32.xlu0 %v1235, 63
    %v1563 = vpop.permute.xlu0 %1562
    %1564 = vrot.lane.b32.xlu0 %v1237, 63
    %v1565 = vpop.permute.xlu0 %1564
    %1566 = vrot.lane.b32.xlu0 %v1239, 63
    %v1567 = vpop.permute.xlu0 %1566
    %1568 = vrot.lane.b32.xlu0 %v1241, 63
    %v1569 = vpop.permute.xlu0 %1568
    %1570 = vrot.lane.b32.xlu0 %v1243, 63
    %v1571 = vpop.permute.xlu0 %1570
    %1572 = vrot.lane.b32.xlu0 %v1245, 63
    %v1573 = vpop.permute.xlu0 %1572
    %1574 = vrot.lane.b32.xlu0 %v1247, 63
    %v1575 = vpop.permute.xlu0 %1574
    %1576 = vrot.lane.b32.xlu0 %v1249, 63
    %v1577 = vpop.permute.xlu0 %1576
    %1578 = vrot.lane.b32.xlu0 %v1251, 63
    %v1579 = vpop.permute.xlu0 %1578
    %v1580 = vsel %vm617, %v1517, %v1519
    %v1581 = vsel %vm617, %v1521, %v1523
    %v1582 = vsel %vm617, %v1525, %v1527
    %v1583 = vsel %vm617, %v1529, %v1531
    %v1584 = vsel %vm617, %v1533, %v1535
    %v1585 = vsel %vm617, %v1537, %v1539
    %v1586 = vsel %vm617, %v1541, %v1543
    %v1587 = vsel %vm617, %v1545, %v1547
    %v1588 = vsel %vm617, %v1549, %v1551
    %v1589 = vsel %vm617, %v1553, %v1555
    %v1590 = vsel %vm617, %v1557, %v1559
    %v1591 = vsel %vm617, %v1561, %v1563
    %v1592 = vsel %vm617, %v1565, %v1567
    %v1593 = vsel %vm617, %v1569, %v1571
    %v1594 = vsel %vm617, %v1573, %v1575
    %v1595 = vsel %vm617, %v1577, %v1579
    %v1612 = vmul.f32 %v1515, %v1580
    %v1613 = vmul.f32 %v1515, %v1581
    %v1614 = vmul.f32 %v1515, %v1582
    %v1615 = vmul.f32 %v1515, %v1583
    %v1616 = vmul.f32 %v1515, %v1584
    %v1617 = vmul.f32 %v1515, %v1585
    %v1618 = vmul.f32 %v1515, %v1586
    %v1619 = vmul.f32 %v1515, %v1587
    %v1620 = vmul.f32 %v1515, %v1588
    %v1621 = vmul.f32 %v1515, %v1589
    %v1622 = vmul.f32 %v1515, %v1590
    %v1623 = vmul.f32 %v1515, %v1591
    %v1624 = vmul.f32 %v1515, %v1592
    %v1625 = vmul.f32 %v1515, %v1593
    %v1626 = vmul.f32 %v1515, %v1594
    %v1627 = vmul.f32 %v1515, %v1595
    %v1628 = vadd.f32 %v1496, %v1612
    %v1629 = vadd.f32 %v1497, %v1613
    %v1630 = vadd.f32 %v1498, %v1614
    %v1631 = vadd.f32 %v1499, %v1615
    %v1632 = vadd.f32 %v1500, %v1616
    %v1633 = vadd.f32 %v1501, %v1617
    %v1634 = vadd.f32 %v1502, %v1618
    %v1635 = vadd.f32 %v1503, %v1619
    %v1636 = vadd.f32 %v1504, %v1620
    %v1637 = vadd.f32 %v1505, %v1621
    %v1638 = vadd.f32 %v1506, %v1622
    %v1639 = vadd.f32 %v1507, %v1623
    %v1640 = vadd.f32 %v1508, %v1624
    %v1641 = vadd.f32 %v1509, %v1625
    %v1642 = vadd.f32 %v1510, %v1626
    %v1643 = vadd.f32 %v1511, %v1627
    %v1644 = vld [vmem:[%s2] sm:$0x1]
    %v1646 = vlaneseq
    %v1647 = vshrl.u32 %v1646, 7
    %v1648 = vsub.s32 0, %v1647
    %v1649 = vrot.slane %v1644, %v1648
    %v1651 = vadd.f32 %v1628, %v1649
    %v1652 = vadd.f32 %v1629, %v1649
    %v1653 = vadd.f32 %v1630, %v1649
    %v1654 = vadd.f32 %v1631, %v1649
    %v1655 = vadd.f32 %v1632, %v1649
    %v1656 = vadd.f32 %v1633, %v1649
    %v1657 = vadd.f32 %v1634, %v1649
    %v1658 = vadd.f32 %v1635, %v1649
    %v1659 = vadd.f32 %v1636, %v1649
    %v1660 = vadd.f32 %v1637, %v1649
    %v1661 = vadd.f32 %v1638, %v1649
    %v1662 = vadd.f32 %v1639, %v1649
    %v1663 = vadd.f32 %v1640, %v1649
    %v1664 = vadd.f32 %v1641, %v1649
    %v1665 = vadd.f32 %v1642, %v1649
    %v1666 = vadd.f32 %v1643, %v1649
    %v1667 = vmax.f32 %v1651, 0.0
    %v1668 = vmax.f32 %v1652, 0.0
    %v1669 = vmax.f32 %v1653, 0.0
    %v1670 = vmax.f32 %v1654, 0.0
    %v1671 = vmax.f32 %v1655, 0.0
    %v1672 = vmax.f32 %v1656, 0.0
    %v1673 = vmax.f32 %v1657, 0.0
    %v1674 = vmax.f32 %v1658, 0.0
    %v1675 = vmax.f32 %v1659, 0.0
    %v1676 = vmax.f32 %v1660, 0.0
    %v1677 = vmax.f32 %v1661, 0.0
    %v1678 = vmax.f32 %v1662, 0.0
    %v1679 = vmax.f32 %v1663, 0.0
    %v1680 = vmax.f32 %v1664, 0.0
    %v1681 = vmax.f32 %v1665, 0.0
    %v1682 = vmax.f32 %v1666, 0.0
    %v1683 = vrot.slane %v1667, 4
    %v1684 = vmax.f32 %v1667, %v1683
    %v1685 = vrot.slane %v1684, 2
    %v1686 = vmax.f32 %v1684, %v1685
    %v1687 = vrot.slane %v1686, 1
    %v1688 = vmax.f32 %v1686, %v1687
    %v1689 = vrot.slane %v1668, 4
    %v1690 = vmax.f32 %v1668, %v1689
    %v1691 = vrot.slane %v1690, 2
    %v1692 = vmax.f32 %v1690, %v1691
    %v1693 = vrot.slane %v1692, 1
    %v1694 = vmax.f32 %v1692, %v1693
    %v1695 = vrot.slane %v1669, 4
    %v1696 = vmax.f32 %v1669, %v1695
    %v1697 = vrot.slane %v1696, 2
    %v1698 = vmax.f32 %v1696, %v1697
    %v1699 = vrot.slane %v1698, 1
    %v1700 = vmax.f32 %v1698, %v1699
    %v1701 = vrot.slane %v1670, 4
    %v1702 = vmax.f32 %v1670, %v1701
    %v1703 = vrot.slane %v1702, 2
    %v1704 = vmax.f32 %v1702, %v1703
    %v1705 = vrot.slane %v1704, 1
    %v1706 = vmax.f32 %v1704, %v1705
    %v1707 = vrot.slane %v1671, 4
    %v1708 = vmax.f32 %v1671, %v1707
    %v1709 = vrot.slane %v1708, 2
    %v1710 = vmax.f32 %v1708, %v1709
    %v1711 = vrot.slane %v1710, 1
    %v1712 = vmax.f32 %v1710, %v1711
    %v1713 = vrot.slane %v1672, 4
    %v1714 = vmax.f32 %v1672, %v1713
    %v1715 = vrot.slane %v1714, 2
    %v1716 = vmax.f32 %v1714, %v1715
    %v1717 = vrot.slane %v1716, 1
    %v1718 = vmax.f32 %v1716, %v1717
    %v1719 = vrot.slane %v1673, 4
    %v1720 = vmax.f32 %v1673, %v1719
    %v1721 = vrot.slane %v1720, 2
    %v1722 = vmax.f32 %v1720, %v1721
    %v1723 = vrot.slane %v1722, 1
    %v1724 = vmax.f32 %v1722, %v1723
    %v1725 = vrot.slane %v1674, 4
    %v1726 = vmax.f32 %v1674, %v1725
    %v1727 = vrot.slane %v1726, 2
    %v1728 = vmax.f32 %v1726, %v1727
    %v1729 = vrot.slane %v1728, 1
    %v1730 = vmax.f32 %v1728, %v1729
    %v1731 = vrot.slane %v1675, 4
    %v1732 = vmax.f32 %v1675, %v1731
    %v1733 = vrot.slane %v1732, 2
    %v1734 = vmax.f32 %v1732, %v1733
    %v1735 = vrot.slane %v1734, 1
    %v1736 = vmax.f32 %v1734, %v1735
    %v1737 = vrot.slane %v1676, 4
    %v1738 = vmax.f32 %v1676, %v1737
    %v1739 = vrot.slane %v1738, 2
    %v1740 = vmax.f32 %v1738, %v1739
    %v1741 = vrot.slane %v1740, 1
    %v1742 = vmax.f32 %v1740, %v1741
    %v1743 = vrot.slane %v1677, 4
    %v1744 = vmax.f32 %v1677, %v1743
    %v1745 = vrot.slane %v1744, 2
    %v1746 = vmax.f32 %v1744, %v1745
    %v1747 = vrot.slane %v1746, 1
    %v1748 = vmax.f32 %v1746, %v1747
    %v1749 = vrot.slane %v1678, 4
    %v1750 = vmax.f32 %v1678, %v1749
    %v1751 = vrot.slane %v1750, 2
    %v1752 = vmax.f32 %v1750, %v1751
    %v1753 = vrot.slane %v1752, 1
    %v1754 = vmax.f32 %v1752, %v1753
    %v1755 = vrot.slane %v1679, 4
    %v1756 = vmax.f32 %v1679, %v1755
    %v1757 = vrot.slane %v1756, 2
    %v1758 = vmax.f32 %v1756, %v1757
    %v1759 = vrot.slane %v1758, 1
    %v1760 = vmax.f32 %v1758, %v1759
    %v1761 = vrot.slane %v1680, 4
    %v1762 = vmax.f32 %v1680, %v1761
    %v1763 = vrot.slane %v1762, 2
    %v1764 = vmax.f32 %v1762, %v1763
    %v1765 = vrot.slane %v1764, 1
    %v1766 = vmax.f32 %v1764, %v1765
    %v1767 = vrot.slane %v1681, 4
    %v1768 = vmax.f32 %v1681, %v1767
    %v1769 = vrot.slane %v1768, 2
    %v1770 = vmax.f32 %v1768, %v1769
    %v1771 = vrot.slane %v1770, 1
    %v1772 = vmax.f32 %v1770, %v1771
    %v1773 = vrot.slane %v1682, 4
    %v1774 = vmax.f32 %v1682, %v1773
    %v1775 = vrot.slane %v1774, 2
    %v1776 = vmax.f32 %v1774, %v1775
    %v1777 = vrot.slane %v1776, 1
    %v1778 = vmax.f32 %v1776, %v1777
    %vm1795 = vcmask 1041409
    %v1796 = vsel %vm1795, %v1694, %v1688
    %vm1797 = vcmask 1042434
    %v1798 = vsel %vm1797, %v1700, %v1796
    %vm1799 = vcmask 1043459
    %v1800 = vsel %vm1799, %v1706, %v1798
    %vm1801 = vcmask 1044484
    %v1802 = vsel %vm1801, %v1712, %v1800
    %vm1803 = vcmask 1045509
    %v1804 = vsel %vm1803, %v1718, %v1802
    %vm1805 = vcmask 1046534
    %v1806 = vsel %vm1805, %v1724, %v1804
    %vm1807 = vcmask 1047559
    %v1808 = vsel %vm1807, %v1730, %v1806
    %v1809 = vsel %vm1795, %v1742, %v1736
    %v1810 = vsel %vm1797, %v1748, %v1809
    %v1811 = vsel %vm1799, %v1754, %v1810
    %v1812 = vsel %vm1801, %v1760, %v1811
    %v1813 = vsel %vm1803, %v1766, %v1812
    %v1814 = vsel %vm1805, %v1772, %v1813
    %v1815 = vsel %vm1807, %v1778, %v1814
    %vm1818 = vcmask 64512
    %v1819 = vsel %vm1818, %v1808, -inf
    %1820 = vmax.xlane.f32.xlu0 %v1819
    %v1821 = vpop.xlane.xlu0 %1820
    %v1822 = vsel %vm1818, %v1815, -inf
    %1823 = vmax.xlane.f32.xlu0 %v1822
    %v1824 = vpop.xlane.xlu0 %1823
    %vm1825 = vcmask 130112
    %v1826 = vsel %vm1825, %v1808, -inf
    %1827 = vmax.xlane.f32.xlu0 %v1826
    %v1828 = vpop.xlane.xlu0 %1827
    %v1829 = vsel %vm1825, %v1815, -inf
    %1830 = vmax.xlane.f32.xlu0 %v1829
    %v1831 = vpop.xlane.xlu0 %1830
    %vm1832 = vcmask 195712
    %v1833 = vsel %vm1832, %v1808, -inf
    %1834 = vmax.xlane.f32.xlu0 %v1833
    %v1835 = vpop.xlane.xlu0 %1834
    %v1836 = vsel %vm1832, %v1815, -inf
    %1837 = vmax.xlane.f32.xlu0 %v1836
    %v1838 = vpop.xlane.xlu0 %1837
    %vm1839 = vcmask 261312
    %v1840 = vsel %vm1839, %v1808, -inf
    %1841 = vmax.xlane.f32.xlu0 %v1840
    %v1842 = vpop.xlane.xlu0 %1841
    %v1843 = vsel %vm1839, %v1815, -inf
    %1844 = vmax.xlane.f32.xlu0 %v1843
    %v1845 = vpop.xlane.xlu0 %1844
    %vm1846 = vcmask 326912
    %v1847 = vsel %vm1846, %v1808, -inf
    %1848 = vmax.xlane.f32.xlu0 %v1847
    %v1849 = vpop.xlane.xlu0 %1848
    %v1850 = vsel %vm1846, %v1815, -inf
    %1851 = vmax.xlane.f32.xlu0 %v1850
    %v1852 = vpop.xlane.xlu0 %1851
    %vm1853 = vcmask 392512
    %v1854 = vsel %vm1853, %v1808, -inf
    %1855 = vmax.xlane.f32.xlu0 %v1854
    %v1856 = vpop.xlane.xlu0 %1855
    %v1857 = vsel %vm1853, %v1815, -inf
    %1858 = vmax.xlane.f32.xlu0 %v1857
    %v1859 = vpop.xlane.xlu0 %1858
    %vm1860 = vcmask 458112
    %v1861 = vsel %vm1860, %v1808, -inf
    %1862 = vmax.xlane.f32.xlu0 %v1861
    %v1863 = vpop.xlane.xlu0 %1862
    %v1864 = vsel %vm1860, %v1815, -inf
    %1865 = vmax.xlane.f32.xlu0 %v1864
    %v1866 = vpop.xlane.xlu0 %1865
    %vm1867 = vcmask 523712
    %v1868 = vsel %vm1867, %v1808, -inf
    %1869 = vmax.xlane.f32.xlu0 %v1868
    %v1870 = vpop.xlane.xlu0 %1869
    %v1871 = vsel %vm1867, %v1815, -inf
    %1872 = vmax.xlane.f32.xlu0 %v1871
    %v1873 = vpop.xlane.xlu0 %1872
    %vm1874 = vcmask 589312
    %v1875 = vsel %vm1874, %v1808, -inf
    %1876 = vmax.xlane.f32.xlu0 %v1875
    %v1877 = vpop.xlane.xlu0 %1876
    %v1878 = vsel %vm1874, %v1815, -inf
    %1879 = vmax.xlane.f32.xlu0 %v1878
    %v1880 = vpop.xlane.xlu0 %1879
    %vm1881 = vcmask 654912
    %v1882 = vsel %vm1881, %v1808, -inf
    %1883 = vmax.xlane.f32.xlu0 %v1882
    %v1884 = vpop.xlane.xlu0 %1883
    %v1885 = vsel %vm1881, %v1815, -inf
    %1886 = vmax.xlane.f32.xlu0 %v1885
    %v1887 = vpop.xlane.xlu0 %1886
    %vm1888 = vcmask 720512
    %v1889 = vsel %vm1888, %v1808, -inf
    %1890 = vmax.xlane.f32.xlu0 %v1889
    %v1891 = vpop.xlane.xlu0 %1890
    %v1892 = vsel %vm1888, %v1815, -inf
    %1893 = vmax.xlane.f32.xlu0 %v1892
    %v1894 = vpop.xlane.xlu0 %1893
    %vm1895 = vcmask 786112
    %v1896 = vsel %vm1895, %v1808, -inf
    %1897 = vmax.xlane.f32.xlu0 %v1896
    %v1898 = vpop.xlane.xlu0 %1897
    %v1899 = vsel %vm1895, %v1815, -inf
    %1900 = vmax.xlane.f32.xlu0 %v1899
    %v1901 = vpop.xlane.xlu0 %1900
    %vm1902 = vcmask 851712
    %v1903 = vsel %vm1902, %v1808, -inf
    %1904 = vmax.xlane.f32.xlu0 %v1903
    %v1905 = vpop.xlane.xlu0 %1904
    %v1906 = vsel %vm1902, %v1815, -inf
    %1907 = vmax.xlane.f32.xlu0 %v1906
    %v1908 = vpop.xlane.xlu0 %1907
    %vm1909 = vcmask 917312
    %v1910 = vsel %vm1909, %v1808, -inf
    %1911 = vmax.xlane.f32.xlu0 %v1910
    %v1912 = vpop.xlane.xlu0 %1911
    %v1913 = vsel %vm1909, %v1815, -inf
    %1914 = vmax.xlane.f32.xlu0 %v1913
    %v1915 = vpop.xlane.xlu0 %1914
    %vm1916 = vcmask 982912
    %v1917 = vsel %vm1916, %v1808, -inf
    %1918 = vmax.xlane.f32.xlu0 %v1917
    %v1919 = vpop.xlane.xlu0 %1918
    %v1920 = vsel %vm1916, %v1815, -inf
    %1921 = vmax.xlane.f32.xlu0 %v1920
    %v1922 = vpop.xlane.xlu0 %1921
    %vm1923 = vcmask 1048512
    %v1924 = vsel %vm1923, %v1808, -inf
    %1925 = vmax.xlane.f32.xlu0 %v1924
    %v1926 = vpop.xlane.xlu0 %1925
    %v1927 = vsel %vm1923, %v1815, -inf
    %1928 = vmax.xlane.f32.xlu0 %v1927
    %v1929 = vpop.xlane.xlu0 %1928
    %v1932 = vlaneseq
    %v1933 = vand.u32 %v1932, 127
    %v1934 = vlaneseq
    %v1935 = vshrl.u32 %v1934, 7
    %v1936 = vsub.s32 %v1933, %v1935
    %v1937 = vrot.slane %v1821, %v1936
    %v1938 = vlaneseq
    %v1939 = vshrl.u32 %v1938, 7
    %v1940 = vsub.s32 %v1933, %v1939
    %v1941 = vrot.slane %v1824, %v1940
    %v1942 = vsel %vm1795, %v1941, %v1937
    %v1946 = vadd.s32 %v1933, 4294967288
    %v1947 = vlaneseq
    %v1948 = vshrl.u32 %v1947, 7
    %v1949 = vsub.s32 %v1946, %v1948
    %v1950 = vrot.slane %v1828, %v1949
    %v1951 = vlaneseq
    %v1952 = vshrl.u32 %v1951, 7
    %v1953 = vsub.s32 %v1946, %v1952
    %v1954 = vrot.slane %v1831, %v1953
    %v1955 = vsel %vm1795, %v1954, %v1950
    %v1959 = vadd.s32 %v1933, 4294967280
    %v1960 = vlaneseq
    %v1961 = vshrl.u32 %v1960, 7
    %v1962 = vsub.s32 %v1959, %v1961
    %v1963 = vrot.slane %v1835, %v1962
    %v1964 = vlaneseq
    %v1965 = vshrl.u32 %v1964, 7
    %v1966 = vsub.s32 %v1959, %v1965
    %v1967 = vrot.slane %v1838, %v1966
    %v1968 = vsel %vm1795, %v1967, %v1963
    %v1972 = vadd.s32 %v1933, 4294967272
    %v1973 = vlaneseq
    %v1974 = vshrl.u32 %v1973, 7
    %v1975 = vsub.s32 %v1972, %v1974
    %v1976 = vrot.slane %v1842, %v1975
    %v1977 = vlaneseq
    %v1978 = vshrl.u32 %v1977, 7
    %v1979 = vsub.s32 %v1972, %v1978
    %v1980 = vrot.slane %v1845, %v1979
    %v1981 = vsel %vm1795, %v1980, %v1976
    %v1985 = vadd.s32 %v1933, 4294967264
    %v1986 = vlaneseq
    %v1987 = vshrl.u32 %v1986, 7
    %v1988 = vsub.s32 %v1985, %v1987
    %v1989 = vrot.slane %v1849, %v1988
    %v1990 = vlaneseq
    %v1991 = vshrl.u32 %v1990, 7
    %v1992 = vsub.s32 %v1985, %v1991
    %v1993 = vrot.slane %v1852, %v1992
    %v1994 = vsel %vm1795, %v1993, %v1989
    %v1998 = vadd.s32 %v1933, 4294967256
    %v1999 = vlaneseq
    %v2000 = vshrl.u32 %v1999, 7
    %v2001 = vsub.s32 %v1998, %v2000
    %v2002 = vrot.slane %v1856, %v2001
    %v2003 = vlaneseq
    %v2004 = vshrl.u32 %v2003, 7
    %v2005 = vsub.s32 %v1998, %v2004
    %v2006 = vrot.slane %v1859, %v2005
    %v2007 = vsel %vm1795, %v2006, %v2002
    %v2011 = vadd.s32 %v1933, 4294967248
    %v2012 = vlaneseq
    %v2013 = vshrl.u32 %v2012, 7
    %v2014 = vsub.s32 %v2011, %v2013
    %v2015 = vrot.slane %v1863, %v2014
    %v2016 = vlaneseq
    %v2017 = vshrl.u32 %v2016, 7
    %v2018 = vsub.s32 %v2011, %v2017
    %v2019 = vrot.slane %v1866, %v2018
    %v2020 = vsel %vm1795, %v2019, %v2015
    %v2024 = vadd.s32 %v1933, 4294967240
    %v2025 = vlaneseq
    %v2026 = vshrl.u32 %v2025, 7
    %v2027 = vsub.s32 %v2024, %v2026
    %v2028 = vrot.slane %v1870, %v2027
    %v2029 = vlaneseq
    %v2030 = vshrl.u32 %v2029, 7
    %v2031 = vsub.s32 %v2024, %v2030
    %v2032 = vrot.slane %v1873, %v2031
    %v2033 = vsel %vm1795, %v2032, %v2028
    %v2037 = vadd.s32 %v1933, 4294967232
    %v2038 = vlaneseq
    %v2039 = vshrl.u32 %v2038, 7
    %v2040 = vsub.s32 %v2037, %v2039
    %v2041 = vrot.slane %v1877, %v2040
    %v2042 = vlaneseq
    %v2043 = vshrl.u32 %v2042, 7
    %v2044 = vsub.s32 %v2037, %v2043
    %v2045 = vrot.slane %v1880, %v2044
    %v2046 = vsel %vm1795, %v2045, %v2041
    %v2050 = vadd.s32 %v1933, 4294967224
    %v2051 = vlaneseq
    %v2052 = vshrl.u32 %v2051, 7
    %v2053 = vsub.s32 %v2050, %v2052
    %v2054 = vrot.slane %v1884, %v2053
    %v2055 = vlaneseq
    %v2056 = vshrl.u32 %v2055, 7
    %v2057 = vsub.s32 %v2050, %v2056
    %v2058 = vrot.slane %v1887, %v2057
    %v2059 = vsel %vm1795, %v2058, %v2054
    %v2063 = vadd.s32 %v1933, 4294967216
    %v2064 = vlaneseq
    %v2065 = vshrl.u32 %v2064, 7
    %v2066 = vsub.s32 %v2063, %v2065
    %v2067 = vrot.slane %v1891, %v2066
    %v2068 = vlaneseq
    %v2069 = vshrl.u32 %v2068, 7
    %v2070 = vsub.s32 %v2063, %v2069
    %v2071 = vrot.slane %v1894, %v2070
    %v2072 = vsel %vm1795, %v2071, %v2067
    %v2076 = vadd.s32 %v1933, 4294967208
    %v2077 = vlaneseq
    %v2078 = vshrl.u32 %v2077, 7
    %v2079 = vsub.s32 %v2076, %v2078
    %v2080 = vrot.slane %v1898, %v2079
    %v2081 = vlaneseq
    %v2082 = vshrl.u32 %v2081, 7
    %v2083 = vsub.s32 %v2076, %v2082
    %v2084 = vrot.slane %v1901, %v2083
    %v2085 = vsel %vm1795, %v2084, %v2080
    %v2089 = vadd.s32 %v1933, 4294967200
    %v2090 = vlaneseq
    %v2091 = vshrl.u32 %v2090, 7
    %v2092 = vsub.s32 %v2089, %v2091
    %v2093 = vrot.slane %v1905, %v2092
    %v2094 = vlaneseq
    %v2095 = vshrl.u32 %v2094, 7
    %v2096 = vsub.s32 %v2089, %v2095
    %v2097 = vrot.slane %v1908, %v2096
    %v2098 = vsel %vm1795, %v2097, %v2093
    %v2102 = vadd.s32 %v1933, 4294967192
    %v2103 = vlaneseq
    %v2104 = vshrl.u32 %v2103, 7
    %v2105 = vsub.s32 %v2102, %v2104
    %v2106 = vrot.slane %v1912, %v2105
    %v2107 = vlaneseq
    %v2108 = vshrl.u32 %v2107, 7
    %v2109 = vsub.s32 %v2102, %v2108
    %v2110 = vrot.slane %v1915, %v2109
    %v2111 = vsel %vm1795, %v2110, %v2106
    %v2115 = vadd.s32 %v1933, 4294967184
    %v2116 = vlaneseq
    %v2117 = vshrl.u32 %v2116, 7
    %v2118 = vsub.s32 %v2115, %v2117
    %v2119 = vrot.slane %v1919, %v2118
    %v2120 = vlaneseq
    %v2121 = vshrl.u32 %v2120, 7
    %v2122 = vsub.s32 %v2115, %v2121
    %v2123 = vrot.slane %v1922, %v2122
    %v2124 = vsel %vm1795, %v2123, %v2119
    %v2128 = vadd.s32 %v1933, 4294967176
    %v2129 = vlaneseq
    %v2130 = vshrl.u32 %v2129, 7
    %v2131 = vsub.s32 %v2128, %v2130
    %v2132 = vrot.slane %v1926, %v2131
    %v2133 = vlaneseq
    %v2134 = vshrl.u32 %v2133, 7
    %v2135 = vsub.s32 %v2128, %v2134
    %v2136 = vrot.slane %v1929, %v2135
    %v2137 = vsel %vm1795, %v2136, %v2132
    %v2139 = vsel %vm1818, %v1942, %v1955
    %vm2140 = vcmask 130048
    %v2141 = vsel %vm2140, %v2139, %v1968
    %vm2142 = vcmask 195584
    %v2143 = vsel %vm2142, %v2141, %v1981
    %vm2144 = vcmask 261120
    %v2145 = vsel %vm2144, %v2143, %v1994
    %vm2146 = vcmask 326656
    %v2147 = vsel %vm2146, %v2145, %v2007
    %vm2148 = vcmask 392192
    %v2149 = vsel %vm2148, %v2147, %v2020
    %vm2150 = vcmask 457728
    %v2151 = vsel %vm2150, %v2149, %v2033
    %v2152 = vsel %vm215, %v2151, %v2046
    %vm2153 = vcmask 588800
    %v2154 = vsel %vm2153, %v2152, %v2059
    %vm2155 = vcmask 654336
    %v2156 = vsel %vm2155, %v2154, %v2072
    %vm2157 = vcmask 719872
    %v2158 = vsel %vm2157, %v2156, %v2085
    %vm2159 = vcmask 785408
    %v2160 = vsel %vm2159, %v2158, %v2098
    %vm2161 = vcmask 850944
    %v2162 = vsel %vm2161, %v2160, %v2111
    %vm2163 = vcmask 916480
    %v2164 = vsel %vm2163, %v2162, %v2124
    %vm2165 = vcmask 982016
    %v2166 = vsel %vm2165, %v2164, %v2137
    %v2167 = vld [vmem:[%s3] sm:$0xff]
    %v2168 = vld [vmem:[%s3 + $0x8] sm:$0xff]
    %v2169 = vld [vmem:[%s3 + $0x10] sm:$0xff]
    %v2170 = vld [vmem:[%s3 + $0x18] sm:$0xff]
    %v2171 = vld [vmem:[%s3 + $0x20] sm:$0xff]
    %v2172 = vld [vmem:[%s3 + $0x28] sm:$0xff]
    %v2173 = vld [vmem:[%s3 + $0x30] sm:$0xff]
    %v2174 = vld [vmem:[%s3 + $0x38] sm:$0xff]
    %v2175 = vld [vmem:[%s3 + $0x40] sm:$0xff]
    %v2176 = vld [vmem:[%s3 + $0x48] sm:$0xff]
    %v2177 = vld [vmem:[%s3 + $0x50] sm:$0xff]
    %v2178 = vld [vmem:[%s3 + $0x58] sm:$0xff]
    %v2179 = vld [vmem:[%s3 + $0x60] sm:$0xff]
    %v2180 = vld [vmem:[%s3 + $0x68] sm:$0xff]
    %v2181 = vld [vmem:[%s3 + $0x70] sm:$0xff]
    %v2182 = vld [vmem:[%s3 + $0x78] sm:$0xff]
    %v2183 = vld [vmem:[%s4] sm:$0x1]
    %v2185 = vlaneseq
    %v2186 = vshrl.u32 %v2185, 7
    %v2187 = vsub.s32 0, %v2186
    %v2188 = vrot.slane %v2183, %v2187
    %2190 = vmatprep.subr.mxu0 0.0
    %2191 = vmatpush1.msra.mxu0 %v2167
    %2192 = vmatprep.subr.mxu0 0.0
    %2193 = vmatpush1.msra.mxu0 %v2168
    %2194 = vmatprep.subr.mxu0 0.0
    %2195 = vmatpush1.msra.mxu0 %v2169
    %2196 = vmatprep.subr.mxu0 0.0
    %2197 = vmatpush1.msra.mxu0 %v2170
    %2198 = vmatprep.subr.mxu0 0.0
    %2199 = vmatpush1.msra.mxu0 %v2171
    %2200 = vmatprep.subr.mxu0 0.0
    %2201 = vmatpush1.msra.mxu0 %v2172
    %2202 = vmatprep.subr.mxu0 0.0
    %2203 = vmatpush1.msra.mxu0 %v2173
    %2204 = vmatprep.subr.mxu0 0.0
    %2205 = vmatpush1.msra.mxu0 %v2174
    %2206 = vmatprep.subr.mxu0 0.0
    %2207 = vmatpush1.msra.mxu0 %v2175
    %2208 = vmatprep.subr.mxu0 0.0
    %2209 = vmatpush1.msra.mxu0 %v2176
    %2210 = vmatprep.subr.mxu0 0.0
    %2211 = vmatpush1.msra.mxu0 %v2177
    %2212 = vmatprep.subr.mxu0 0.0
    %2213 = vmatpush1.msra.mxu0 %v2178
    %2214 = vmatprep.subr.mxu0 0.0
    %2215 = vmatpush1.msra.mxu0 %v2179
    %2216 = vmatprep.subr.mxu0 0.0
    %2217 = vmatpush1.msra.mxu0 %v2180
    %2218 = vmatprep.subr.mxu0 0.0
    %2219 = vmatpush1.msra.mxu0 %v2181
    %2220 = vmatprep.subr.mxu0 0.0
    %2221 = vmatpush1.msra.mxu0 %v2182
    %2222 = vmatprep.subr.mxu0 0.0
    %2223 = vmatpush1.msra.mxu0 0.0
    %2224 = vmatprep.subr.mxu0 0.0
    %2225 = vmatpush1.msra.mxu0 0.0
    %2226 = vmatprep.subr.mxu0 0.0
    %2227 = vmatpush1.msra.mxu0 0.0
    %2228 = vmatprep.subr.mxu0 0.0
    %2229 = vmatpush1.msra.mxu0 0.0
    %2230 = vmatprep.subr.mxu0 0.0
    %2231 = vmatpush1.msra.mxu0 0.0
    %2232 = vmatprep.subr.mxu0 0.0
    %2233 = vmatpush1.msra.mxu0 0.0
    %2234 = vmatprep.subr.mxu0 0.0
    %2235 = vmatpush1.msra.mxu0 0.0
    %2236 = vmatprep.subr.mxu0 0.0
    %2237 = vmatpush1.msra.mxu0 0.0
    %2238 = vmatprep.subr.mxu0 0.0
    %2239 = vmatpush1.msra.mxu0 0.0
    %2240 = vmatprep.subr.mxu0 0.0
    %2241 = vmatpush1.msra.mxu0 0.0
    %2242 = vmatprep.subr.mxu0 0.0
    %2243 = vmatpush1.msra.mxu0 0.0
    %2244 = vmatprep.subr.mxu0 0.0
    %2245 = vmatpush1.msra.mxu0 0.0
    %2246 = vmatprep.subr.mxu0 0.0
    %2247 = vmatpush1.msra.mxu0 0.0
    %2248 = vmatprep.subr.mxu0 0.0
    %2249 = vmatpush1.msra.mxu0 0.0
    %2250 = vmatprep.subr.mxu0 0.0
    %2251 = vmatpush1.msra.mxu0 0.0
    %2252 = vmatprep.subr.mxu0 0.0
    %2253 = vmatpush1.msra.mxu0 0.0
    %2254 = vmatprep.mubr.f32.mxu0 0.0
    %2255 = vmatmul.mubr.f32.gmra.mrb[0].mxu0 %v2166
    %v2256 = vpop.f32.mrb[0].mxu0
    %v2257 = vadd.f32 %v2188, %v2256
    %v2258 = vpop.f32.mrb[0].mxu0
    %2259 = vdwg.mxu0
    %v2262 = vunpack.c.l.s4 1966171168
    %v2263 = vunpack.c.0.s8 %v2262
    %v2264 = vlaneseq
    %v2265 = vshrl.u32 %v2264, 7
    %v2266 = vsub.s32 %v2263, %v2265
    %v2267 = vrot.slane %v2257, %v2266
    %v2268 = vcombine.high %v2267, %v2267
    %v2270 = vunpack.c.l.s4 1966171168
    %v2271 = vunpack.c.0.s8 %v2270
    %v2272 = vlaneseq
    %v2273 = vshrl.u32 %v2272, 7
    %v2274 = vsub.s32 %v2271, %v2273
    %v2275 = vrot.slane %v2267, %v2274
    %v2277 = vunpack.c.l.s4 1966171168
    %v2278 = vunpack.c.0.s8 %v2277
    %v2279 = vlaneseq
    %v2280 = vshrl.u32 %v2279, 7
    %v2281 = vsub.s32 %v2278, %v2280
    %v2282 = vrot.slane %v2268, %v2281
    %2285 = vst [vmem:[#allocation3] sm:$0x1] %v2275
    %2286 = vst [vmem:[#allocation3 + $0x1] sm:$0x1] %v2282
    // Predicated region
    $region22: #{med_smallest_forward.1} parent=1 // pred_check
      _
    $region23: #{med_smallest_forward.1} parent=1 // pred_check_branch
      %2288 = sbr.rel (0) target = $region25
    $region24: #{med_smallest_forward.1} parent=1 // pred_region
      %s2290 = ssub.s32 32, 32
      %2291 = vsyncadd [#allocation4], %s2290
      %s2292 = sshll.u32 [#allocation3], 4
      %s2293 = int_to_ptr.vmem [resolvable:$true] %s2292
      %2298 = dma.vmem_to_hbm [thread:$0]  %s2293, 32, %s5, [#allocation4], 16, 16, 1
    $region25: #{med_smallest_forward.1} parent=1 // pred_fallthru
      _
    // Predicated region
    $region26: #{med_smallest_forward.1} parent=1 // pred_check
      _
    $region27: #{med_smallest_forward.1} parent=1 // pred_check_branch
      %2300 = sbr.rel (0) target = $region29
    $region28: #{med_smallest_forward.1} parent=1 // pred_region
      %2301 = dma.done [#allocation4], 32
    $region29: #{med_smallest_forward.1} parent=1 // pred_fallthru
      _
    %2302 = vsyncpa [#allocation4], 1

</llo_original>
